<compile_context>
chip_gen: v5e
topology: v5e:2x2
jax: 0.10.0
libtpu: 0.0.40
codegen_flags: <defaults>
</compile_context>

<pallas_src>
import jax
import jax.numpy as jnp
from jax.experimental import pallas as pl
from jax.experimental.pallas import tpu as pltpu  # noqa: F401  (TPU backend)


# ----------------------------------------------------------------------------
# Fused kernel factory
# ----------------------------------------------------------------------------
def _make_jdda_rnn_kernel(batch, seq_len, hidden_size, num_layers):
    B, S, H = batch, seq_len, hidden_size

    def kernel(*refs):
        # refs: x_sm, (w_ih, w_hh, bias) * num_layers, w1, b1, w2, b2,
        #       probs_out, hidden_out
        x_ref = refs[0]
        lstm_refs = refs[1:1 + 3 * num_layers]
        w1_ref, b1_ref, w2_ref, b2_ref = refs[1 + 3 * num_layers:
                                              5 + 3 * num_layers]
        probs_ref, hidden_ref = refs[-2], refs[-1]

        # Time-major input, rows [t*B : (t+1)*B] are time step t.
        inp = x_ref[...]                                  # (S*B, F)

        last_outs = None
        for layer in range(num_layers):
            # Hoist invariant weight loads out of the unrolled time loop.
            w_ih = lstm_refs[3 * layer + 0][...]          # (F_in, 4H)
            w_hh = lstm_refs[3 * layer + 1][...]          # (H, 4H)
            bias = lstm_refs[3 * layer + 2][...]          # (1, 4H) = b_ih + b_hh

            # All input projections at once -- off the serial recurrence path.
            pre_x = jnp.dot(inp, w_ih,
                            preferred_element_type=jnp.float32) + bias  # (S*B, 4H)

            h = jnp.zeros((B, H), jnp.float32)            # h0 = 0
            c = jnp.zeros((B, H), jnp.float32)            # c0 = 0
            outs = []
            for t in range(S):
                # Single lane-dense (B, H) x (H, 4H=128) matmul per step.
                gates = pre_x[t * B:(t + 1) * B, :] + jnp.dot(
                    h, w_hh, preferred_element_type=jnp.float32)        # (B, 4H)
                # PyTorch gate order (i, f, g, o); static 32-lane slices.
                i_g = jax.nn.sigmoid(gates[:, 0 * H:1 * H])
                f_g = jax.nn.sigmoid(gates[:, 1 * H:2 * H])
                g_g = jnp.tanh(gates[:, 2 * H:3 * H])
                o_g = jax.nn.sigmoid(gates[:, 3 * H:4 * H])
                c = f_g * c + i_g * g_g
                h = o_g * jnp.tanh(c)
                outs.append(h)
            last_outs = outs
            # Time-major stacked outputs feed the next layer's batched x-proj.
            inp = jnp.concatenate(outs, axis=0)           # (S*B, H)

        # ---------------- fc1: one (B, S*H=128) x (128, 1024) matmul ----------
        # flatten(out)[b, :] == concat_t out[b, t, :]  (PyTorch reshape order)
        h_flat = jnp.concatenate(last_outs, axis=1)       # (B, S*H)
        h_fc = jnp.dot(h_flat.astype(w1_ref.dtype), w1_ref[...],
                       preferred_element_type=jnp.float32) + b1_ref[...]
        # TODO(synk): nn.Dropout(0.5) treated as inference-mode identity.

        # ---------------- fc2 + softmax(dim=0) --------------------------------
        hidden = jnp.dot(h_fc.astype(w2_ref.dtype), w2_ref[...],
                         preferred_element_type=jnp.float32) + b2_ref[...]
        hidden_ref[...] = hidden

        # softmax along dim=0 (the batch axis), exactly as nn.Softmax(dim=0).
        # Exact division (not approx reciprocal) so column sums are exact.
        m = jnp.max(hidden, axis=0, keepdims=True)
        e = jnp.exp(hidden - m)
        denom = jnp.sum(e, axis=0, keepdims=True)
        probs_ref[...] = e / denom

    return kernel


# ----------------------------------------------------------------------------
# Full model forward (matches JDDA_RNN.forward), single pallas_call
# ----------------------------------------------------------------------------
def jdda_rnn_forward(x, params):
    """x: (batch, seq, input_size), batch-first like the PyTorch module."""
    x = x.astype(jnp.float32)
    B, S, F = x.shape
    H = params["lstm"][0][1].shape[0]          # w_hh: (H, 4H)
    num_layers = len(params["lstm"])
    n_cls = params["w2"].shape[-1]

    # Time-major (S*B, F): row t*B + b is (batch b, step t).  Tiny, off the
    # kernel's hot path; lets the kernel do contiguous row slices per step.
    x_sm = jnp.transpose(x, (1, 0, 2)).reshape(S * B, F)

    flat_lstm = [w for layer in params["lstm"] for w in layer]
    kernel = _make_jdda_rnn_kernel(B, S, H, num_layers)
    out_shapes = (
        jax.ShapeDtypeStruct((B, n_cls), jnp.float32),   # softmax(dim=0) output
        jax.ShapeDtypeStruct((B, n_cls), jnp.float32),   # pre-softmax logits
    )
    probs, hidden = pl.pallas_call(kernel, out_shape=out_shapes)(
        x_sm, *flat_lstm, params["w1"], params["b1"], params["w2"], params["b2"])
    return probs, hidden


# ----------------------------------------------------------------------------
# Deterministic parameter init in kernel-friendly layouts
# ----------------------------------------------------------------------------
def init_params(key, input_size, hidden_size, num_layers, seq_len, n_classes=6):
    """PyTorch-style uniform init, stored pre-fused for the kernel:
       * LSTM weights fused over gates (i, f, g, o): (F, 4H), (H, 4H), (1, 4H)
         with bias = b_ih + b_hh.
       * fc1 weight as (S*H=128, 1024) = Linear(128, 1024).weight.T, bf16.
       * fc2 weight as (1024, n_classes), bf16.
    """
    params = {"lstm": []}
    bound = 1.0 / float(hidden_size) ** 0.5
    feat = input_size
    for _ in range(num_layers):
        key, k1, k2, k3, k4 = jax.random.split(key, 5)
        w_ih = jax.random.uniform(k1, (feat, 4 * hidden_size), jnp.float32,
                                  -bound, bound)
        w_hh = jax.random.uniform(k2, (hidden_size, 4 * hidden_size),
                                  jnp.float32, -bound, bound)
        b_ih = jax.random.uniform(k3, (1, 4 * hidden_size), jnp.float32,
                                  -bound, bound)
        b_hh = jax.random.uniform(k4, (1, 4 * hidden_size), jnp.float32,
                                  -bound, bound)
        params["lstm"].append((w_ih, w_hh, b_ih + b_hh))
        feat = hidden_size

    assert seq_len * hidden_size == 128, "fc1 expects seq_len * hidden_size == 128"
    key, k5, k6, k7, k8 = jax.random.split(key, 5)
    params["w1"] = jax.random.uniform(
        k5, (seq_len * hidden_size, 1024), jnp.float32, -0.05, 0.05
    ).astype(jnp.bfloat16)
    params["b1"] = jax.random.uniform(k6, (1, 1024), jnp.float32, -0.05, 0.05)
    params["w2"] = jax.random.uniform(
        k7, (1024, n_classes), jnp.float32, -0.05, 0.05
    ).astype(jnp.bfloat16)
    params["b2"] = jax.random.uniform(k8, (1, n_classes), jnp.float32,
                                      -0.05, 0.05)
    return params


if __name__ == "__main__":
    # Shapes implied by the module: fc1 expects seq_len * hidden_size == 128.
    batch, seq_len, input_size = 2, 4, 8
    hidden_size, num_layers = 32, 2

    key = jax.random.PRNGKey(0)
    key, kx, kp = jax.random.split(key, 3)
    x = jax.random.normal(kx, (batch, seq_len, input_size), jnp.float32)
    params = init_params(kp, input_size, hidden_size, num_layers, seq_len)

    probs, hidden = jdda_rnn_forward(x, params)
    jax.block_until_ready((probs, hidden))

    assert probs.shape == (batch, 6) and hidden.shape == (batch, 6)
    assert bool(jnp.all(jnp.isfinite(hidden)))
    assert bool(jnp.all(jnp.isfinite(probs)))
    # softmax over dim=0: columns sum to 1 (exact in-kernel division)
    assert jnp.allclose(jnp.sum(probs, axis=0), 1.0, atol=1e-4)
    print("KERNEL_OK")
</pallas_src>

<mosaic_0001>
module attributes {stable_mosaic.version = 11 : i64} {
  func.func @kernel(%arg0: memref<8x8xf32, #tpu.memory_space<vmem>>, %arg1: memref<8x128xf32, #tpu.memory_space<vmem>>, %arg2: memref<32x128xf32, #tpu.memory_space<vmem>>, %arg3: memref<1x128xf32, #tpu.memory_space<vmem>>, %arg4: memref<32x128xf32, #tpu.memory_space<vmem>>, %arg5: memref<32x128xf32, #tpu.memory_space<vmem>>, %arg6: memref<1x128xf32, #tpu.memory_space<vmem>>, %arg7: memref<128x1024xbf16, #tpu.memory_space<vmem>>, %arg8: memref<1x1024xf32, #tpu.memory_space<vmem>>, %arg9: memref<1024x6xbf16, #tpu.memory_space<vmem>>, %arg10: memref<1x6xf32, #tpu.memory_space<vmem>>, %arg11: memref<2x6xf32, #tpu.memory_space<vmem>>, %arg12: memref<2x6xf32, #tpu.memory_space<vmem>>) attributes {dimension_semantics = [], scalar_prefetch = 0 : i64, scratch_operands = 0 : i64, tpu.core_type = #tpu.core_type<tc>} {
    %c0 = arith.constant 0 : index
    %c0_0 = arith.constant 0 : index
    %0 = vector.load %arg0[%c0, %c0_0] : memref<8x8xf32, #tpu.memory_space<vmem>>, vector<8x8xf32>
    %c0_1 = arith.constant 0 : index
    %c0_2 = arith.constant 0 : index
    %1 = vector.load %arg1[%c0_1, %c0_2] : memref<8x128xf32, #tpu.memory_space<vmem>>, vector<8x128xf32>
    %c0_3 = arith.constant 0 : index
    %c0_4 = arith.constant 0 : index
    %2 = vector.load %arg2[%c0_3, %c0_4] : memref<32x128xf32, #tpu.memory_space<vmem>>, vector<32x128xf32>
    %c0_5 = arith.constant 0 : index
    %c0_6 = arith.constant 0 : index
    %3 = vector.load %arg3[%c0_5, %c0_6] : memref<1x128xf32, #tpu.memory_space<vmem>>, vector<1x128xf32>
    %cst = arith.constant dense<0.000000e+00> : vector<8x128xf32>
    %4 = tpu.matmul %0, %1, %cst {dimension_numbers = #tpu.dot_dimension_numbers<[1], [0], [0], [1], [0, 0, 1, 1], [], []>} : vector<8x8xf32>, vector<8x128xf32>, vector<8x128xf32> -> vector<8x128xf32>
    %5 = vector.broadcast %3 : vector<1x128xf32> to vector<8x128xf32>
    %6 = arith.addf %4, %5 : vector<8x128xf32>
    %cst_7 = arith.constant 0.000000e+00 : f32
    %7 = vector.broadcast %cst_7 : f32 to vector<2x32xf32>
    %cst_8 = arith.constant 0.000000e+00 : f32
    %8 = vector.broadcast %cst_8 : f32 to vector<2x32xf32>
    %9 = vector.extract_strided_slice %6 {offsets = [0, 0], sizes = [2, 128], strides = [1, 1]} : vector<8x128xf32> to vector<2x128xf32>
    %cst_9 = arith.constant dense<0.000000e+00> : vector<2x128xf32>
    %10 = tpu.matmul %7, %2, %cst_9 {dimension_numbers = #tpu.dot_dimension_numbers<[1], [0], [0], [1], [0, 0, 1, 1], [], []>} : vector<2x32xf32>, vector<32x128xf32>, vector<2x128xf32> -> vector<2x128xf32>
    %11 = arith.addf %9, %10 : vector<2x128xf32>
    %12 = vector.extract_strided_slice %11 {offsets = [0, 0], sizes = [2, 32], strides = [1, 1]} : vector<2x128xf32> to vector<2x32xf32>
    %13 = arith.negf %12 : vector<2x32xf32>
    %14 = math.exp %13 : vector<2x32xf32>
    %cst_10 = arith.constant 1.000000e+00 : f32
    %15 = vector.broadcast %cst_10 : f32 to vector<2x32xf32>
    %16 = arith.addf %15, %14 : vector<2x32xf32>
    %17 = arith.divf %15, %16 : vector<2x32xf32>
    %18 = vector.extract_strided_slice %11 {offsets = [0, 32], sizes = [2, 32], strides = [1, 1]} : vector<2x128xf32> to vector<2x32xf32>
    %19 = arith.negf %18 : vector<2x32xf32>
    %20 = math.exp %19 : vector<2x32xf32>
    %cst_11 = arith.constant 1.000000e+00 : f32
    %21 = vector.broadcast %cst_11 : f32 to vector<2x32xf32>
    %22 = arith.addf %21, %20 : vector<2x32xf32>
    %23 = arith.divf %21, %22 : vector<2x32xf32>
    %24 = vector.extract_strided_slice %11 {offsets = [0, 64], sizes = [2, 32], strides = [1, 1]} : vector<2x128xf32> to vector<2x32xf32>
    %25 = math.tanh %24 : vector<2x32xf32>
    %26 = vector.extract_strided_slice %11 {offsets = [0, 96], sizes = [2, 32], strides = [1, 1]} : vector<2x128xf32> to vector<2x32xf32>
    %27 = arith.negf %26 : vector<2x32xf32>
    %28 = math.exp %27 : vector<2x32xf32>
    %cst_12 = arith.constant 1.000000e+00 : f32
    %29 = vector.broadcast %cst_12 : f32 to vector<2x32xf32>
    %30 = arith.addf %29, %28 : vector<2x32xf32>
    %31 = arith.divf %29, %30 : vector<2x32xf32>
    %32 = arith.mulf %23, %8 : vector<2x32xf32>
    %33 = arith.mulf %17, %25 : vector<2x32xf32>
    %34 = arith.addf %32, %33 : vector<2x32xf32>
    %35 = math.tanh %34 : vector<2x32xf32>
    %36 = arith.mulf %31, %35 : vector<2x32xf32>
    %37 = vector.extract_strided_slice %6 {offsets = [2, 0], sizes = [2, 128], strides = [1, 1]} : vector<8x128xf32> to vector<2x128xf32>
    %cst_13 = arith.constant dense<0.000000e+00> : vector<2x128xf32>
    %38 = tpu.matmul %36, %2, %cst_13 {dimension_numbers = #tpu.dot_dimension_numbers<[1], [0], [0], [1], [0, 0, 1, 1], [], []>} : vector<2x32xf32>, vector<32x128xf32>, vector<2x128xf32> -> vector<2x128xf32>
    %39 = arith.addf %37, %38 : vector<2x128xf32>
    %40 = vector.extract_strided_slice %39 {offsets = [0, 0], sizes = [2, 32], strides = [1, 1]} : vector<2x128xf32> to vector<2x32xf32>
    %41 = arith.negf %40 : vector<2x32xf32>
    %42 = math.exp %41 : vector<2x32xf32>
    %cst_14 = arith.constant 1.000000e+00 : f32
    %43 = vector.broadcast %cst_14 : f32 to vector<2x32xf32>
    %44 = arith.addf %43, %42 : vector<2x32xf32>
    %45 = arith.divf %43, %44 : vector<2x32xf32>
    %46 = vector.extract_strided_slice %39 {offsets = [0, 32], sizes = [2, 32], strides = [1, 1]} : vector<2x128xf32> to vector<2x32xf32>
    %47 = arith.negf %46 : vector<2x32xf32>
    %48 = math.exp %47 : vector<2x32xf32>
    %cst_15 = arith.constant 1.000000e+00 : f32
    %49 = vector.broadcast %cst_15 : f32 to vector<2x32xf32>
    %50 = arith.addf %49, %48 : vector<2x32xf32>
    %51 = arith.divf %49, %50 : vector<2x32xf32>
    %52 = vector.extract_strided_slice %39 {offsets = [0, 64], sizes = [2, 32], strides = [1, 1]} : vector<2x128xf32> to vector<2x32xf32>
    %53 = math.tanh %52 : vector<2x32xf32>
    %54 = vector.extract_strided_slice %39 {offsets = [0, 96], sizes = [2, 32], strides = [1, 1]} : vector<2x128xf32> to vector<2x32xf32>
    %55 = arith.negf %54 : vector<2x32xf32>
    %56 = math.exp %55 : vector<2x32xf32>
    %cst_16 = arith.constant 1.000000e+00 : f32
    %57 = vector.broadcast %cst_16 : f32 to vector<2x32xf32>
    %58 = arith.addf %57, %56 : vector<2x32xf32>
    %59 = arith.divf %57, %58 : vector<2x32xf32>
    %60 = arith.mulf %51, %34 : vector<2x32xf32>
    %61 = arith.mulf %45, %53 : vector<2x32xf32>
    %62 = arith.addf %60, %61 : vector<2x32xf32>
    %63 = math.tanh %62 : vector<2x32xf32>
    %64 = arith.mulf %59, %63 : vector<2x32xf32>
    %65 = vector.extract_strided_slice %6 {offsets = [4, 0], sizes = [2, 128], strides = [1, 1]} : vector<8x128xf32> to vector<2x128xf32>
    %cst_17 = arith.constant dense<0.000000e+00> : vector<2x128xf32>
    %66 = tpu.matmul %64, %2, %cst_17 {dimension_numbers = #tpu.dot_dimension_numbers<[1], [0], [0], [1], [0, 0, 1, 1], [], []>} : vector<2x32xf32>, vector<32x128xf32>, vector<2x128xf32> -> vector<2x128xf32>
    %67 = arith.addf %65, %66 : vector<2x128xf32>
    %68 = vector.extract_strided_slice %67 {offsets = [0, 0], sizes = [2, 32], strides = [1, 1]} : vector<2x128xf32> to vector<2x32xf32>
    %69 = arith.negf %68 : vector<2x32xf32>
    %70 = math.exp %69 : vector<2x32xf32>
    %cst_18 = arith.constant 1.000000e+00 : f32
    %71 = vector.broadcast %cst_18 : f32 to vector<2x32xf32>
    %72 = arith.addf %71, %70 : vector<2x32xf32>
    %73 = arith.divf %71, %72 : vector<2x32xf32>
    %74 = vector.extract_strided_slice %67 {offsets = [0, 32], sizes = [2, 32], strides = [1, 1]} : vector<2x128xf32> to vector<2x32xf32>
    %75 = arith.negf %74 : vector<2x32xf32>
    %76 = math.exp %75 : vector<2x32xf32>
    %cst_19 = arith.constant 1.000000e+00 : f32
    %77 = vector.broadcast %cst_19 : f32 to vector<2x32xf32>
    %78 = arith.addf %77, %76 : vector<2x32xf32>
    %79 = arith.divf %77, %78 : vector<2x32xf32>
    %80 = vector.extract_strided_slice %67 {offsets = [0, 64], sizes = [2, 32], strides = [1, 1]} : vector<2x128xf32> to vector<2x32xf32>
    %81 = math.tanh %80 : vector<2x32xf32>
    %82 = vector.extract_strided_slice %67 {offsets = [0, 96], sizes = [2, 32], strides = [1, 1]} : vector<2x128xf32> to vector<2x32xf32>
    %83 = arith.negf %82 : vector<2x32xf32>
    %84 = math.exp %83 : vector<2x32xf32>
    %cst_20 = arith.constant 1.000000e+00 : f32
    %85 = vector.broadcast %cst_20 : f32 to vector<2x32xf32>
    %86 = arith.addf %85, %84 : vector<2x32xf32>
    %87 = arith.divf %85, %86 : vector<2x32xf32>
    %88 = arith.mulf %79, %62 : vector<2x32xf32>
    %89 = arith.mulf %73, %81 : vector<2x32xf32>
    %90 = arith.addf %88, %89 : vector<2x32xf32>
    %91 = math.tanh %90 : vector<2x32xf32>
    %92 = arith.mulf %87, %91 : vector<2x32xf32>
    %93 = vector.extract_strided_slice %6 {offsets = [6, 0], sizes = [2, 128], strides = [1, 1]} : vector<8x128xf32> to vector<2x128xf32>
    %cst_21 = arith.constant dense<0.000000e+00> : vector<2x128xf32>
    %94 = tpu.matmul %92, %2, %cst_21 {dimension_numbers = #tpu.dot_dimension_numbers<[1], [0], [0], [1], [0, 0, 1, 1], [], []>} : vector<2x32xf32>, vector<32x128xf32>, vector<2x128xf32> -> vector<2x128xf32>
    %95 = arith.addf %93, %94 : vector<2x128xf32>
    %96 = vector.extract_strided_slice %95 {offsets = [0, 0], sizes = [2, 32], strides = [1, 1]} : vector<2x128xf32> to vector<2x32xf32>
    %97 = arith.negf %96 : vector<2x32xf32>
    %98 = math.exp %97 : vector<2x32xf32>
    %cst_22 = arith.constant 1.000000e+00 : f32
    %99 = vector.broadcast %cst_22 : f32 to vector<2x32xf32>
    %100 = arith.addf %99, %98 : vector<2x32xf32>
    %101 = arith.divf %99, %100 : vector<2x32xf32>
    %102 = vector.extract_strided_slice %95 {offsets = [0, 32], sizes = [2, 32], strides = [1, 1]} : vector<2x128xf32> to vector<2x32xf32>
    %103 = arith.negf %102 : vector<2x32xf32>
    %104 = math.exp %103 : vector<2x32xf32>
    %cst_23 = arith.constant 1.000000e+00 : f32
    %105 = vector.broadcast %cst_23 : f32 to vector<2x32xf32>
    %106 = arith.addf %105, %104 : vector<2x32xf32>
    %107 = arith.divf %105, %106 : vector<2x32xf32>
    %108 = vector.extract_strided_slice %95 {offsets = [0, 64], sizes = [2, 32], strides = [1, 1]} : vector<2x128xf32> to vector<2x32xf32>
    %109 = math.tanh %108 : vector<2x32xf32>
    %110 = vector.extract_strided_slice %95 {offsets = [0, 96], sizes = [2, 32], strides = [1, 1]} : vector<2x128xf32> to vector<2x32xf32>
    %111 = arith.negf %110 : vector<2x32xf32>
    %112 = math.exp %111 : vector<2x32xf32>
    %cst_24 = arith.constant 1.000000e+00 : f32
    %113 = vector.broadcast %cst_24 : f32 to vector<2x32xf32>
    %114 = arith.addf %113, %112 : vector<2x32xf32>
    %115 = arith.divf %113, %114 : vector<2x32xf32>
    %116 = arith.mulf %107, %90 : vector<2x32xf32>
    %117 = arith.mulf %101, %109 : vector<2x32xf32>
    %118 = arith.addf %116, %117 : vector<2x32xf32>
    %119 = math.tanh %118 : vector<2x32xf32>
    %120 = arith.mulf %115, %119 : vector<2x32xf32>
    %121 = tpu.concatenate %36, %64, %92, %120 in 0 : vector<2x32xf32>, vector<2x32xf32>, vector<2x32xf32>, vector<2x32xf32> -> vector<8x32xf32>
    %c0_25 = arith.constant 0 : index
    %c0_26 = arith.constant 0 : index
    %122 = vector.load %arg4[%c0_25, %c0_26] : memref<32x128xf32, #tpu.memory_space<vmem>>, vector<32x128xf32>
    %c0_27 = arith.constant 0 : index
    %c0_28 = arith.constant 0 : index
    %123 = vector.load %arg5[%c0_27, %c0_28] : memref<32x128xf32, #tpu.memory_space<vmem>>, vector<32x128xf32>
    %c0_29 = arith.constant 0 : index
    %c0_30 = arith.constant 0 : index
    %124 = vector.load %arg6[%c0_29, %c0_30] : memref<1x128xf32, #tpu.memory_space<vmem>>, vector<1x128xf32>
    %cst_31 = arith.constant dense<0.000000e+00> : vector<8x128xf32>
    %125 = tpu.matmul %121, %122, %cst_31 {dimension_numbers = #tpu.dot_dimension_numbers<[1], [0], [0], [1], [0, 0, 1, 1], [], []>} : vector<8x32xf32>, vector<32x128xf32>, vector<8x128xf32> -> vector<8x128xf32>
    %126 = vector.broadcast %124 : vector<1x128xf32> to vector<8x128xf32>
    %127 = arith.addf %125, %126 : vector<8x128xf32>
    %cst_32 = arith.constant 0.000000e+00 : f32
    %128 = vector.broadcast %cst_32 : f32 to vector<2x32xf32>
    %cst_33 = arith.constant 0.000000e+00 : f32
    %129 = vector.broadcast %cst_33 : f32 to vector<2x32xf32>
    %130 = vector.extract_strided_slice %127 {offsets = [0, 0], sizes = [2, 128], strides = [1, 1]} : vector<8x128xf32> to vector<2x128xf32>
    %cst_34 = arith.constant dense<0.000000e+00> : vector<2x128xf32>
    %131 = tpu.matmul %128, %123, %cst_34 {dimension_numbers = #tpu.dot_dimension_numbers<[1], [0], [0], [1], [0, 0, 1, 1], [], []>} : vector<2x32xf32>, vector<32x128xf32>, vector<2x128xf32> -> vector<2x128xf32>
    %132 = arith.addf %130, %131 : vector<2x128xf32>
    %133 = vector.extract_strided_slice %132 {offsets = [0, 0], sizes = [2, 32], strides = [1, 1]} : vector<2x128xf32> to vector<2x32xf32>
    %134 = arith.negf %133 : vector<2x32xf32>
    %135 = math.exp %134 : vector<2x32xf32>
    %cst_35 = arith.constant 1.000000e+00 : f32
    %136 = vector.broadcast %cst_35 : f32 to vector<2x32xf32>
    %137 = arith.addf %136, %135 : vector<2x32xf32>
    %138 = arith.divf %136, %137 : vector<2x32xf32>
    %139 = vector.extract_strided_slice %132 {offsets = [0, 32], sizes = [2, 32], strides = [1, 1]} : vector<2x128xf32> to vector<2x32xf32>
    %140 = arith.negf %139 : vector<2x32xf32>
    %141 = math.exp %140 : vector<2x32xf32>
    %cst_36 = arith.constant 1.000000e+00 : f32
    %142 = vector.broadcast %cst_36 : f32 to vector<2x32xf32>
    %143 = arith.addf %142, %141 : vector<2x32xf32>
    %144 = arith.divf %142, %143 : vector<2x32xf32>
    %145 = vector.extract_strided_slice %132 {offsets = [0, 64], sizes = [2, 32], strides = [1, 1]} : vector<2x128xf32> to vector<2x32xf32>
    %146 = math.tanh %145 : vector<2x32xf32>
    %147 = vector.extract_strided_slice %132 {offsets = [0, 96], sizes = [2, 32], strides = [1, 1]} : vector<2x128xf32> to vector<2x32xf32>
    %148 = arith.negf %147 : vector<2x32xf32>
    %149 = math.exp %148 : vector<2x32xf32>
    %cst_37 = arith.constant 1.000000e+00 : f32
    %150 = vector.broadcast %cst_37 : f32 to vector<2x32xf32>
    %151 = arith.addf %150, %149 : vector<2x32xf32>
    %152 = arith.divf %150, %151 : vector<2x32xf32>
    %153 = arith.mulf %144, %129 : vector<2x32xf32>
    %154 = arith.mulf %138, %146 : vector<2x32xf32>
    %155 = arith.addf %153, %154 : vector<2x32xf32>
    %156 = math.tanh %155 : vector<2x32xf32>
    %157 = arith.mulf %152, %156 : vector<2x32xf32>
    %158 = vector.extract_strided_slice %127 {offsets = [2, 0], sizes = [2, 128], strides = [1, 1]} : vector<8x128xf32> to vector<2x128xf32>
    %cst_38 = arith.constant dense<0.000000e+00> : vector<2x128xf32>
    %159 = tpu.matmul %157, %123, %cst_38 {dimension_numbers = #tpu.dot_dimension_numbers<[1], [0], [0], [1], [0, 0, 1, 1], [], []>} : vector<2x32xf32>, vector<32x128xf32>, vector<2x128xf32> -> vector<2x128xf32>
    %160 = arith.addf %158, %159 : vector<2x128xf32>
    %161 = vector.extract_strided_slice %160 {offsets = [0, 0], sizes = [2, 32], strides = [1, 1]} : vector<2x128xf32> to vector<2x32xf32>
    %162 = arith.negf %161 : vector<2x32xf32>
    %163 = math.exp %162 : vector<2x32xf32>
    %cst_39 = arith.constant 1.000000e+00 : f32
    %164 = vector.broadcast %cst_39 : f32 to vector<2x32xf32>
    %165 = arith.addf %164, %163 : vector<2x32xf32>
    %166 = arith.divf %164, %165 : vector<2x32xf32>
    %167 = vector.extract_strided_slice %160 {offsets = [0, 32], sizes = [2, 32], strides = [1, 1]} : vector<2x128xf32> to vector<2x32xf32>
    %168 = arith.negf %167 : vector<2x32xf32>
    %169 = math.exp %168 : vector<2x32xf32>
    %cst_40 = arith.constant 1.000000e+00 : f32
    %170 = vector.broadcast %cst_40 : f32 to vector<2x32xf32>
    %171 = arith.addf %170, %169 : vector<2x32xf32>
    %172 = arith.divf %170, %171 : vector<2x32xf32>
    %173 = vector.extract_strided_slice %160 {offsets = [0, 64], sizes = [2, 32], strides = [1, 1]} : vector<2x128xf32> to vector<2x32xf32>
    %174 = math.tanh %173 : vector<2x32xf32>
    %175 = vector.extract_strided_slice %160 {offsets = [0, 96], sizes = [2, 32], strides = [1, 1]} : vector<2x128xf32> to vector<2x32xf32>
    %176 = arith.negf %175 : vector<2x32xf32>
    %177 = math.exp %176 : vector<2x32xf32>
    %cst_41 = arith.constant 1.000000e+00 : f32
    %178 = vector.broadcast %cst_41 : f32 to vector<2x32xf32>
    %179 = arith.addf %178, %177 : vector<2x32xf32>
    %180 = arith.divf %178, %179 : vector<2x32xf32>
    %181 = arith.mulf %172, %155 : vector<2x32xf32>
    %182 = arith.mulf %166, %174 : vector<2x32xf32>
    %183 = arith.addf %181, %182 : vector<2x32xf32>
    %184 = math.tanh %183 : vector<2x32xf32>
    %185 = arith.mulf %180, %184 : vector<2x32xf32>
    %186 = vector.extract_strided_slice %127 {offsets = [4, 0], sizes = [2, 128], strides = [1, 1]} : vector<8x128xf32> to vector<2x128xf32>
    %cst_42 = arith.constant dense<0.000000e+00> : vector<2x128xf32>
    %187 = tpu.matmul %185, %123, %cst_42 {dimension_numbers = #tpu.dot_dimension_numbers<[1], [0], [0], [1], [0, 0, 1, 1], [], []>} : vector<2x32xf32>, vector<32x128xf32>, vector<2x128xf32> -> vector<2x128xf32>
    %188 = arith.addf %186, %187 : vector<2x128xf32>
    %189 = vector.extract_strided_slice %188 {offsets = [0, 0], sizes = [2, 32], strides = [1, 1]} : vector<2x128xf32> to vector<2x32xf32>
    %190 = arith.negf %189 : vector<2x32xf32>
    %191 = math.exp %190 : vector<2x32xf32>
    %cst_43 = arith.constant 1.000000e+00 : f32
    %192 = vector.broadcast %cst_43 : f32 to vector<2x32xf32>
    %193 = arith.addf %192, %191 : vector<2x32xf32>
    %194 = arith.divf %192, %193 : vector<2x32xf32>
    %195 = vector.extract_strided_slice %188 {offsets = [0, 32], sizes = [2, 32], strides = [1, 1]} : vector<2x128xf32> to vector<2x32xf32>
    %196 = arith.negf %195 : vector<2x32xf32>
    %197 = math.exp %196 : vector<2x32xf32>
    %cst_44 = arith.constant 1.000000e+00 : f32
    %198 = vector.broadcast %cst_44 : f32 to vector<2x32xf32>
    %199 = arith.addf %198, %197 : vector<2x32xf32>
    %200 = arith.divf %198, %199 : vector<2x32xf32>
    %201 = vector.extract_strided_slice %188 {offsets = [0, 64], sizes = [2, 32], strides = [1, 1]} : vector<2x128xf32> to vector<2x32xf32>
    %202 = math.tanh %201 : vector<2x32xf32>
    %203 = vector.extract_strided_slice %188 {offsets = [0, 96], sizes = [2, 32], strides = [1, 1]} : vector<2x128xf32> to vector<2x32xf32>
    %204 = arith.negf %203 : vector<2x32xf32>
    %205 = math.exp %204 : vector<2x32xf32>
    %cst_45 = arith.constant 1.000000e+00 : f32
    %206 = vector.broadcast %cst_45 : f32 to vector<2x32xf32>
    %207 = arith.addf %206, %205 : vector<2x32xf32>
    %208 = arith.divf %206, %207 : vector<2x32xf32>
    %209 = arith.mulf %200, %183 : vector<2x32xf32>
    %210 = arith.mulf %194, %202 : vector<2x32xf32>
    %211 = arith.addf %209, %210 : vector<2x32xf32>
    %212 = math.tanh %211 : vector<2x32xf32>
    %213 = arith.mulf %208, %212 : vector<2x32xf32>
    %214 = vector.extract_strided_slice %127 {offsets = [6, 0], sizes = [2, 128], strides = [1, 1]} : vector<8x128xf32> to vector<2x128xf32>
    %cst_46 = arith.constant dense<0.000000e+00> : vector<2x128xf32>
    %215 = tpu.matmul %213, %123, %cst_46 {dimension_numbers = #tpu.dot_dimension_numbers<[1], [0], [0], [1], [0, 0, 1, 1], [], []>} : vector<2x32xf32>, vector<32x128xf32>, vector<2x128xf32> -> vector<2x128xf32>
    %216 = arith.addf %214, %215 : vector<2x128xf32>
    %217 = vector.extract_strided_slice %216 {offsets = [0, 0], sizes = [2, 32], strides = [1, 1]} : vector<2x128xf32> to vector<2x32xf32>
    %218 = arith.negf %217 : vector<2x32xf32>
    %219 = math.exp %218 : vector<2x32xf32>
    %cst_47 = arith.constant 1.000000e+00 : f32
    %220 = vector.broadcast %cst_47 : f32 to vector<2x32xf32>
    %221 = arith.addf %220, %219 : vector<2x32xf32>
    %222 = arith.divf %220, %221 : vector<2x32xf32>
    %223 = vector.extract_strided_slice %216 {offsets = [0, 32], sizes = [2, 32], strides = [1, 1]} : vector<2x128xf32> to vector<2x32xf32>
    %224 = arith.negf %223 : vector<2x32xf32>
    %225 = math.exp %224 : vector<2x32xf32>
    %cst_48 = arith.constant 1.000000e+00 : f32
    %226 = vector.broadcast %cst_48 : f32 to vector<2x32xf32>
    %227 = arith.addf %226, %225 : vector<2x32xf32>
    %228 = arith.divf %226, %227 : vector<2x32xf32>
    %229 = vector.extract_strided_slice %216 {offsets = [0, 64], sizes = [2, 32], strides = [1, 1]} : vector<2x128xf32> to vector<2x32xf32>
    %230 = math.tanh %229 : vector<2x32xf32>
    %231 = vector.extract_strided_slice %216 {offsets = [0, 96], sizes = [2, 32], strides = [1, 1]} : vector<2x128xf32> to vector<2x32xf32>
    %232 = arith.negf %231 : vector<2x32xf32>
    %233 = math.exp %232 : vector<2x32xf32>
    %cst_49 = arith.constant 1.000000e+00 : f32
    %234 = vector.broadcast %cst_49 : f32 to vector<2x32xf32>
    %235 = arith.addf %234, %233 : vector<2x32xf32>
    %236 = arith.divf %234, %235 : vector<2x32xf32>
    %237 = arith.mulf %228, %211 : vector<2x32xf32>
    %238 = arith.mulf %222, %230 : vector<2x32xf32>
    %239 = arith.addf %237, %238 : vector<2x32xf32>
    %240 = math.tanh %239 : vector<2x32xf32>
    %241 = arith.mulf %236, %240 : vector<2x32xf32>
    %242 = tpu.concatenate %157, %185, %213, %241 in 1 : vector<2x32xf32>, vector<2x32xf32>, vector<2x32xf32>, vector<2x32xf32> -> vector<2x128xf32>
    %243 = arith.truncf %242 : vector<2x128xf32> to vector<2x128xbf16>
    %c0_50 = arith.constant 0 : index
    %c0_51 = arith.constant 0 : index
    %244 = vector.load %arg7[%c0_50, %c0_51] : memref<128x1024xbf16, #tpu.memory_space<vmem>>, vector<128x1024xbf16>
    %cst_52 = arith.constant dense<0.000000e+00> : vector<2x1024xf32>
    %245 = tpu.matmul %243, %244, %cst_52 {dimension_numbers = #tpu.dot_dimension_numbers<[1], [0], [0], [1], [0, 0, 1, 1], [], []>} : vector<2x128xbf16>, vector<128x1024xbf16>, vector<2x1024xf32> -> vector<2x1024xf32>
    %c0_53 = arith.constant 0 : index
    %c0_54 = arith.constant 0 : index
    %246 = vector.load %arg8[%c0_53, %c0_54] : memref<1x1024xf32, #tpu.memory_space<vmem>>, vector<1x1024xf32>
    %247 = vector.broadcast %246 : vector<1x1024xf32> to vector<2x1024xf32>
    %248 = arith.addf %245, %247 : vector<2x1024xf32>
    %249 = arith.truncf %248 : vector<2x1024xf32> to vector<2x1024xbf16>
    %c0_55 = arith.constant 0 : index
    %c0_56 = arith.constant 0 : index
    %250 = vector.load %arg9[%c0_55, %c0_56] : memref<1024x6xbf16, #tpu.memory_space<vmem>>, vector<1024x6xbf16>
    %cst_57 = arith.constant dense<0.000000e+00> : vector<2x6xf32>
    %251 = tpu.matmul %249, %250, %cst_57 {dimension_numbers = #tpu.dot_dimension_numbers<[1], [0], [0], [1], [0, 0, 1, 1], [], []>} : vector<2x1024xbf16>, vector<1024x6xbf16>, vector<2x6xf32> -> vector<2x6xf32>
    %c0_58 = arith.constant 0 : index
    %c0_59 = arith.constant 0 : index
    %252 = vector.load %arg10[%c0_58, %c0_59] : memref<1x6xf32, #tpu.memory_space<vmem>>, vector<1x6xf32>
    %253 = vector.broadcast %252 : vector<1x6xf32> to vector<2x6xf32>
    %254 = arith.addf %251, %253 : vector<2x6xf32>
    %c0_60 = arith.constant 0 : index
    %c0_61 = arith.constant 0 : index
    %255 = vector.load %arg12[%c0_60, %c0_61] : memref<2x6xf32, #tpu.memory_space<vmem>>, vector<2x6xf32>
    tpu.vector_store %arg12[%c0_60, %c0_61], %254 {strides = array<i32>} : memref<2x6xf32, #tpu.memory_space<vmem>>, vector<2x6xf32>,
    %cst_62 = arith.constant dense<0xFF800000> : vector<6xf32>
    %256 = vector.multi_reduction <maximumf>, %254, %cst_62 [0] : vector<2x6xf32> to vector<6xf32>
    %257 = vector.shape_cast %256 : vector<6xf32> to vector<1x6xf32>
    %258 = vector.broadcast %257 : vector<1x6xf32> to vector<2x6xf32>
    %259 = arith.subf %254, %258 : vector<2x6xf32>
    %260 = math.exp %259 : vector<2x6xf32>
    %cst_63 = arith.constant dense<0.000000e+00> : vector<6xf32>
    %261 = vector.multi_reduction <add>, %260, %cst_63 [0] : vector<2x6xf32> to vector<6xf32>
    %262 = vector.shape_cast %261 : vector<6xf32> to vector<1x6xf32>
    %263 = vector.broadcast %262 : vector<1x6xf32> to vector<2x6xf32>
    %264 = arith.divf %260, %263 : vector<2x6xf32>
    %c0_64 = arith.constant 0 : index
    %c0_65 = arith.constant 0 : index
    %265 = vector.load %arg11[%c0_64, %c0_65] : memref<2x6xf32, #tpu.memory_space<vmem>>, vector<2x6xf32>
    tpu.vector_store %arg11[%c0_64, %c0_65], %264 {strides = array<i32>} : memref<2x6xf32, #tpu.memory_space<vmem>>, vector<2x6xf32>,
    return
  }
}

</mosaic_0001>

<llo_original>
// kernel: tpu_custom_call.1
$region0: #{tpu_custom_call.1}
  #allocation0 [shape = 'u32[]', space=smem, size = 0x4, offset = 0x4, fixed_abs, tag = 'smem constant byte address 0x4 - core index']
  #allocation1 [shape = 'u32[72,128]{1,0:T(1,128)}', space=vmem, size = 0x9000, scoped, tag = 'internal scratch']
  %s0 = inlined_call_operand.hbm [shape: f32[8,8], index: 0, kind: input, shape index: {}]
  %s1 = inlined_call_operand.hbm [shape: f32[8,128], index: 1, kind: input, shape index: {}]
  %s2 = inlined_call_operand.vmem [shape: f32[32,128], index: 2, kind: input, shape index: {}]
  %s3 = inlined_call_operand.vmem [shape: f32[1,128], index: 3, kind: input, shape index: {}]
  %s4 = inlined_call_operand.hbm [shape: f32[32,128], index: 4, kind: input, shape index: {}]
  %s5 = inlined_call_operand.hbm [shape: f32[32,128], index: 5, kind: input, shape index: {}]
  %s6 = inlined_call_operand.vmem [shape: f32[1,128], index: 6, kind: input, shape index: {}]
  %s7 = inlined_call_operand.vmem [shape: bf16[128,1024], index: 7, kind: input, shape index: {}]
  %s8 = inlined_call_operand.hbm [shape: f32[1,1024], index: 8, kind: input, shape index: {}]
  %s9 = inlined_call_operand.vmem [shape: bf16[1024,6], index: 9, kind: input, shape index: {}]
  %s10 = inlined_call_operand.vmem [shape: f32[1,6], index: 10, kind: input, shape index: {}]
  %s11 = inlined_call_operand.hbm [shape: f32[2,6], index: 11, kind: output, shape index: {0}]
  %s12 = inlined_call_operand.hbm [shape: f32[2,6], index: 12, kind: output, shape index: {1}]
  %13 = xla_tuple %s11, %s12
  %s14 = sld [smem:[#allocation0]]
  $region82: #{tpu_custom_call.1} parent=0
    _
  %s16 = ssub.s32 1, %s14
  %s17 = scalar_select 0, %s16, %s14
  $region1: #{tpu_custom_call.1} parent=0
    #allocation2 [shape = 'u8[4096]{0}', space=vmem, size = 0x1000, scoped, tag = 'input window, operand 0, single buffered']
    #allocation3 [shape = 's32[1]{0}', space=sflag, size = 0x4, scoped, tag = 'scoped memory for tpu_custom_call.1']
    #allocation4 [shape = 's32[1]{0}', space=sflag, size = 0x4, scoped, tag = 'scoped memory for tpu_custom_call.1']
    #allocation5 [shape = 'u8[4096]{0}', space=vmem, size = 0x1000, scoped, tag = 'input window, operand 1, single buffered']
    #allocation6 [shape = 's32[1]{0}', space=sflag, size = 0x4, scoped, tag = 'scoped memory for tpu_custom_call.1']
    #allocation7 [shape = 'u8[16384]{0}', space=vmem, size = 0x4000, scoped, tag = 'input window, operand 4, single buffered']
    #allocation8 [shape = 'u8[16384]{0}', space=vmem, size = 0x4000, scoped, tag = 'input window, operand 5, single buffered']
    #allocation9 [shape = 's32[1]{0}', space=sflag, size = 0x4, scoped, tag = 'scoped memory for tpu_custom_call.1']
    #allocation10 [shape = 'u8[4096]{0}', space=vmem, size = 0x1000, scoped, tag = 'input window, operand 8, single buffered']
    #allocation11 [shape = 'u8[1024]{0}', space=vmem, size = 0x400, scoped, tag = 'output window, operand 0, single buffered']
    #allocation12 [shape = 'u8[1024]{0}', space=vmem, size = 0x400, scoped, tag = 'output window, operand 1, single buffered']
    #allocation13 [shape = 's32[1]{0}', space=sflag, size = 0x4, scoped, tag = 'scoped memory for tpu_custom_call.1']
    %18 = vsyncpa [#allocation3], 0
    %19 = vsyncpa [#allocation6], 0
    %20 = vsyncpa [#allocation9], 0
    %21 = vsyncpa [#allocation4], 0
    %22 = vsyncpa [#allocation13], 0
    // Predicated region
    $region2: #{tpu_custom_call.1} parent=1 // pred_check
      _
    $region3: #{tpu_custom_call.1} parent=1 // pred_check_branch
      %24 = sbr.rel (0) target = $region5
    $region4: #{tpu_custom_call.1} parent=1 // pred_region
      %26 = vsyncadd [#allocation3], 0
      %s28 = sshll.u32 %s0, 4
      %s29 = int_to_ptr.hbm [resolvable:$true] %s28
      %s30 = sshll.u32 [#allocation2], 4
      %s31 = int_to_ptr.vmem [resolvable:$true] %s30
      %33 = dma.hbm_to_vmem [thread:$0]  %s29, 128, %s31, [#allocation3]
    $region5: #{tpu_custom_call.1} parent=1 // pred_fallthru
      _
    // Predicated region
    $region6: #{tpu_custom_call.1} parent=1 // pred_check
      _
    $region7: #{tpu_custom_call.1} parent=1 // pred_check_branch
      %35 = sbr.rel (0) target = $region9
    $region8: #{tpu_custom_call.1} parent=1 // pred_region
      %37 = vsyncadd [#allocation6], 0
      %s39 = sshll.u32 %s1, 4
      %s40 = int_to_ptr.hbm [resolvable:$true] %s39
      %s41 = sshll.u32 [#allocation5], 4
      %s42 = int_to_ptr.vmem [resolvable:$true] %s41
      %44 = dma.hbm_to_vmem [thread:$0]  %s40, 128, %s42, [#allocation6]
    $region9: #{tpu_custom_call.1} parent=1 // pred_fallthru
      _
    // Predicated region
    $region10: #{tpu_custom_call.1} parent=1 // pred_check
      _
    $region11: #{tpu_custom_call.1} parent=1 // pred_check_branch
      %46 = sbr.rel (0) target = $region13
    $region12: #{tpu_custom_call.1} parent=1 // pred_region
      _
    $region13: #{tpu_custom_call.1} parent=1 // pred_fallthru
      _
    // Predicated region
    $region14: #{tpu_custom_call.1} parent=1 // pred_check
      _
    $region15: #{tpu_custom_call.1} parent=1 // pred_check_branch
      %48 = sbr.rel (0) target = $region17
    $region16: #{tpu_custom_call.1} parent=1 // pred_region
      _
    $region17: #{tpu_custom_call.1} parent=1 // pred_fallthru
      _
    // Predicated region
    $region18: #{tpu_custom_call.1} parent=1 // pred_check
      _
    $region19: #{tpu_custom_call.1} parent=1 // pred_check_branch
      %50 = sbr.rel (0) target = $region21
    $region20: #{tpu_custom_call.1} parent=1 // pred_region
      %52 = vsyncadd [#allocation6], 0
      %s53 = sshll.u32 %s4, 4
      %s54 = int_to_ptr.hbm [resolvable:$true] %s53
      %s55 = sshll.u32 [#allocation7], 4
      %s56 = int_to_ptr.vmem [resolvable:$true] %s55
      %61 = dma.hbm_to_vmem [thread:$0]  %s54, 512, %s56, [#allocation6], 128, 128, 8
    $region21: #{tpu_custom_call.1} parent=1 // pred_fallthru
      _
    // Predicated region
    $region22: #{tpu_custom_call.1} parent=1 // pred_check
      _
    $region23: #{tpu_custom_call.1} parent=1 // pred_check_branch
      %63 = sbr.rel (0) target = $region25
    $region24: #{tpu_custom_call.1} parent=1 // pred_region
      %65 = vsyncadd [#allocation9], 0
      %s66 = sshll.u32 %s5, 4
      %s67 = int_to_ptr.hbm [resolvable:$true] %s66
      %s68 = sshll.u32 [#allocation8], 4
      %s69 = int_to_ptr.vmem [resolvable:$true] %s68
      %74 = dma.hbm_to_vmem [thread:$0]  %s67, 512, %s69, [#allocation9], 128, 128, 8
    $region25: #{tpu_custom_call.1} parent=1 // pred_fallthru
      _
    // Predicated region
    $region26: #{tpu_custom_call.1} parent=1 // pred_check
      _
    $region27: #{tpu_custom_call.1} parent=1 // pred_check_branch
      %76 = sbr.rel (0) target = $region29
    $region28: #{tpu_custom_call.1} parent=1 // pred_region
      _
    $region29: #{tpu_custom_call.1} parent=1 // pred_fallthru
      _
    // Predicated region
    $region30: #{tpu_custom_call.1} parent=1 // pred_check
      _
    $region31: #{tpu_custom_call.1} parent=1 // pred_check_branch
      %78 = sbr.rel (0) target = $region33
    $region32: #{tpu_custom_call.1} parent=1 // pred_region
      _
    $region33: #{tpu_custom_call.1} parent=1 // pred_fallthru
      _
    // Predicated region
    $region34: #{tpu_custom_call.1} parent=1 // pred_check
      _
    $region35: #{tpu_custom_call.1} parent=1 // pred_check_branch
      %80 = sbr.rel (0) target = $region37
    $region36: #{tpu_custom_call.1} parent=1 // pred_region
      %82 = vsyncadd [#allocation9], 0
      %s84 = sshll.u32 %s8, 4
      %s85 = int_to_ptr.hbm [resolvable:$true] %s84
      %s86 = sshll.u32 [#allocation10], 4
      %s87 = int_to_ptr.vmem [resolvable:$true] %s86
      %89 = dma.hbm_to_vmem [thread:$0]  %s85, 128, %s87, [#allocation9]
    $region37: #{tpu_custom_call.1} parent=1 // pred_fallthru
      _
    // Predicated region
    $region38: #{tpu_custom_call.1} parent=1 // pred_check
      _
    $region39: #{tpu_custom_call.1} parent=1 // pred_check_branch
      %91 = sbr.rel (0) target = $region41
    $region40: #{tpu_custom_call.1} parent=1 // pred_region
      _
    $region41: #{tpu_custom_call.1} parent=1 // pred_fallthru
      _
    // Predicated region
    $region42: #{tpu_custom_call.1} parent=1 // pred_check
      _
    $region43: #{tpu_custom_call.1} parent=1 // pred_check_branch
      %93 = sbr.rel (0) target = $region45
    $region44: #{tpu_custom_call.1} parent=1 // pred_region
      _
    $region45: #{tpu_custom_call.1} parent=1 // pred_fallthru
      _
    // Predicated region
    $region46: #{tpu_custom_call.1} parent=1 // pred_check
      _
    $region47: #{tpu_custom_call.1} parent=1 // pred_check_branch
      %95 = sbr.rel (0) target = $region49
    $region48: #{tpu_custom_call.1} parent=1 // pred_region
      %97 = dma.done [#allocation3], 128
    $region49: #{tpu_custom_call.1} parent=1 // pred_fallthru
      _
    // Predicated region
    $region50: #{tpu_custom_call.1} parent=1 // pred_check
      _
    $region51: #{tpu_custom_call.1} parent=1 // pred_check_branch
      %99 = sbr.rel (0) target = $region53
    $region52: #{tpu_custom_call.1} parent=1 // pred_region
      %101 = dma.done [#allocation6], 128
    $region53: #{tpu_custom_call.1} parent=1 // pred_fallthru
      _
    // Predicated region
    $region54: #{tpu_custom_call.1} parent=1 // pred_check
      _
    $region55: #{tpu_custom_call.1} parent=1 // pred_check_branch
      %103 = sbr.rel (0) target = $region57
    $region56: #{tpu_custom_call.1} parent=1 // pred_region
      %105 = dma.done [#allocation6], 512
    $region57: #{tpu_custom_call.1} parent=1 // pred_fallthru
      _
    // Predicated region
    $region58: #{tpu_custom_call.1} parent=1 // pred_check
      _
    $region59: #{tpu_custom_call.1} parent=1 // pred_check_branch
      %107 = sbr.rel (0) target = $region61
    $region60: #{tpu_custom_call.1} parent=1 // pred_region
      %109 = dma.done [#allocation9], 512
    $region61: #{tpu_custom_call.1} parent=1 // pred_fallthru
      _
    // Predicated region
    $region62: #{tpu_custom_call.1} parent=1 // pred_check
      _
    $region63: #{tpu_custom_call.1} parent=1 // pred_check_branch
      %111 = sbr.rel (0) target = $region65
    $region64: #{tpu_custom_call.1} parent=1 // pred_region
      %113 = dma.done [#allocation9], 128
    $region65: #{tpu_custom_call.1} parent=1 // pred_fallthru
      _
    %v114 = vld [vmem:[#allocation2] sm:$0xff]
    %v115 = vld [vmem:[#allocation5] sm:$0xff]
    %v116 = vld [vmem:[%s2] sm:$0xff]
    %v117 = vld [vmem:[%s2 + $0x8] sm:$0xff]
    %v118 = vld [vmem:[%s2 + $0x10] sm:$0xff]
    %v119 = vld [vmem:[%s2 + $0x18] sm:$0xff]
    %v120 = vld [vmem:[%s3] sm:$0x1]
    %v122 = vperm.slane %v120, 0
    %vm124 = vcmask 64512
    %v126 = vsel %vm124, %v114, 0
    %128 = vmatpush.msra.mxu0 0.0
    %129 = vmatpush.msra.mxu0 0.0
    %130 = vmatpush.msra.mxu0 0.0
    %131 = vmatpush.msra.mxu0 0.0
    %132 = vmatpush.msra.mxu0 0.0
    %133 = vmatpush.msra.mxu0 0.0
    %134 = vmatpush.msra.mxu0 0.0
    %135 = vmatpush.msra.mxu0 0.0
    %136 = vmatpush.msra.mxu0 0.0
    %137 = vmatpush.msra.mxu0 0.0
    %138 = vmatpush.msra.mxu0 0.0
    %139 = vmatpush.msra.mxu0 0.0
    %140 = vmatpush.msra.mxu0 0.0
    %141 = vmatpush.msra.mxu0 0.0
    %142 = vmatpush.msra.mxu0 0.0
    %143 = vmatpush.msra.mxu0 %v115
    %144 = vmatmul.f32.gmra.mxu0 %v126
    %v145 = vpop.f32.mrf.mxu0
    %v146 = vadd.f32 %v122, %v145
    %147 = vdwg.mxu0
    %vm148 = vcmask 261120
    %v150 = vsel %vm148, 0.0, 0
    %152 = vmatpush.msra.mxu0 0.0
    %153 = vmatpush.msra.mxu0 0.0
    %154 = vmatpush.msra.mxu0 0.0
    %155 = vmatpush.msra.mxu0 0.0
    %156 = vmatpush.msra.mxu0 0.0
    %157 = vmatpush.msra.mxu0 0.0
    %158 = vmatpush.msra.mxu0 0.0
    %159 = vmatpush.msra.mxu0 0.0
    %160 = vmatpush.msra.mxu0 0.0
    %161 = vmatpush.msra.mxu0 0.0
    %162 = vmatpush.msra.mxu0 0.0
    %163 = vmatpush.msra.mxu0 0.0
    %164 = vmatpush.msra.mxu0 %v119
    %165 = vmatpush.msra.mxu0 %v118
    %166 = vmatpush.msra.mxu0 %v117
    %167 = vmatpush.msra.mxu0 %v116
    %168 = vmatmul.f32.gmra.mxu0 %v150
    %v169 = vpop.f32.mrf.mxu0
    %v170 = vadd.f32 0.0, %v169
    %171 = vdwg.mxu0
    %v172 = vadd.f32 %v146, %v170
    %v173 = vxor.u32 %v172, 2147483648
    %v174 = vmul.f32 %v173, 1.442695
    %v175 = vpow.pop %v174
    %v176 = vadd.f32 %v175, 1.0
    %v177 = vrcp.pop %v176
    %v178 = vmul.f32 %v176, %v177
    %v179 = vsub.f32 1.0, %v178
    %v180 = vmul.f32 %v177, %v179
    %v181 = vadd.f32 %v177, %v180
    %vm182 = vweird.f32 %v176
    %vm183 = vweird.f32 %v177
    %vm184 = vmor %vm182, %vm183
    %v185 = vsel %vm184, %v177, %v181
    %v186 = vand.u32 2147483647, %v176
    %vm187 = vcmp.eq.f32.partialorder %v186, 8.507059e+37
    %v188 = vand.u32 %v176, 2147483648
    %v189 = vor.u32 1.1754944e-38, %v188
    %v190 = vsel %vm187, %v189, %v185
    %v191 = vmul.f32 1.0, %v190
    %v192 = vtanh.pop %v172
    %v193 = vmul.f32 %v191, 0.0
    %195 = vrot.lane.b32.xlu0 %v192, 64
    %v196 = vpop.permute.xlu0 %195
    %v198 = vmul.f32 %v191, %v196
    %200 = vrot.lane.b32.xlu0 %v198, 32
    %v201 = vpop.permute.xlu0 %200
    %v203 = vadd.f32 %v193, %v201
    %v204 = vtanh.pop %v203
    %206 = vrot.lane.b32.xlu0 %v204, 64
    %v207 = vpop.permute.xlu0 %206
    %v209 = vmul.f32 %v191, %v207
    %211 = vrot.lane.b32.xlu0 %v209, 32
    %v212 = vpop.permute.xlu0 %211
    %v213 = vsel %vm148, %v212, 0
    %215 = vmatpush.msra.mxu0 0.0
    %216 = vmatpush.msra.mxu0 0.0
    %217 = vmatpush.msra.mxu0 0.0
    %218 = vmatpush.msra.mxu0 0.0
    %219 = vmatpush.msra.mxu0 0.0
    %220 = vmatpush.msra.mxu0 0.0
    %221 = vmatpush.msra.mxu0 0.0
    %222 = vmatpush.msra.mxu0 0.0
    %223 = vmatpush.msra.mxu0 0.0
    %224 = vmatpush.msra.mxu0 0.0
    %225 = vmatpush.msra.mxu0 0.0
    %226 = vmatpush.msra.mxu0 0.0
    %227 = vmatpush.msra.mxu0 %v119
    %228 = vmatpush.msra.mxu0 %v118
    %229 = vmatpush.msra.mxu0 %v117
    %230 = vmatpush.msra.mxu0 %v116
    %231 = vmatmul.f32.gmra.mxu0 %v213
    %v232 = vpop.f32.mrf.mxu0
    %v233 = vadd.f32 0.0, %v232
    %234 = vdwg.mxu0
    %v236 = vrot.slane %v233, 6
    %v238 = vadd.f32 %v146, %v236
    %v239 = vxor.u32 %v238, 2147483648
    %v240 = vmul.f32 %v239, 1.442695
    %v241 = vpow.pop %v240
    %v242 = vadd.f32 %v241, 1.0
    %v243 = vrcp.pop %v242
    %v244 = vmul.f32 %v242, %v243
    %v245 = vsub.f32 1.0, %v244
    %v246 = vmul.f32 %v243, %v245
    %v247 = vadd.f32 %v243, %v246
    %vm248 = vweird.f32 %v242
    %vm249 = vweird.f32 %v243
    %vm250 = vmor %vm248, %vm249
    %v251 = vsel %vm250, %v243, %v247
    %v252 = vand.u32 2147483647, %v242
    %vm253 = vcmp.eq.f32.partialorder %v252, 8.507059e+37
    %v254 = vand.u32 %v242, 2147483648
    %v255 = vor.u32 1.1754944e-38, %v254
    %v256 = vsel %vm253, %v255, %v251
    %v257 = vmul.f32 1.0, %v256
    %v258 = vtanh.pop %v238
    %v260 = vrot.slane %v203, 6
    %v262 = vmul.f32 %v257, %v260
    %264 = vrot.lane.b32.xlu0 %v258, 64
    %v265 = vpop.permute.xlu0 %264
    %v267 = vmul.f32 %v257, %v265
    %269 = vrot.lane.b32.xlu0 %v267, 32
    %v270 = vpop.permute.xlu0 %269
    %v272 = vadd.f32 %v262, %v270
    %v273 = vtanh.pop %v272
    %275 = vrot.lane.b32.xlu0 %v273, 64
    %v276 = vpop.permute.xlu0 %275
    %v278 = vmul.f32 %v257, %v276
    %v280 = vrot.slane %v278, 2
    %281 = vrot.lane.b32.xlu0 %v280, 32
    %v282 = vpop.permute.xlu0 %281
    %v283 = vsel %vm148, %v282, 0
    %285 = vmatpush.msra.mxu0 0.0
    %286 = vmatpush.msra.mxu0 0.0
    %287 = vmatpush.msra.mxu0 0.0
    %288 = vmatpush.msra.mxu0 0.0
    %289 = vmatpush.msra.mxu0 0.0
    %290 = vmatpush.msra.mxu0 0.0
    %291 = vmatpush.msra.mxu0 0.0
    %292 = vmatpush.msra.mxu0 0.0
    %293 = vmatpush.msra.mxu0 0.0
    %294 = vmatpush.msra.mxu0 0.0
    %295 = vmatpush.msra.mxu0 0.0
    %296 = vmatpush.msra.mxu0 0.0
    %297 = vmatpush.msra.mxu0 %v119
    %298 = vmatpush.msra.mxu0 %v118
    %299 = vmatpush.msra.mxu0 %v117
    %300 = vmatpush.msra.mxu0 %v116
    %301 = vmatmul.f32.gmra.mxu0 %v283
    %v302 = vpop.f32.mrf.mxu0
    %v303 = vadd.f32 0.0, %v302
    %304 = vdwg.mxu0
    %v306 = vrot.slane %v303, 4
    %v308 = vadd.f32 %v146, %v306
    %v309 = vxor.u32 %v308, 2147483648
    %v310 = vmul.f32 %v309, 1.442695
    %v311 = vpow.pop %v310
    %v312 = vadd.f32 %v311, 1.0
    %v313 = vrcp.pop %v312
    %v314 = vmul.f32 %v312, %v313
    %v315 = vsub.f32 1.0, %v314
    %v316 = vmul.f32 %v313, %v315
    %v317 = vadd.f32 %v313, %v316
    %vm318 = vweird.f32 %v312
    %vm319 = vweird.f32 %v313
    %vm320 = vmor %vm318, %vm319
    %v321 = vsel %vm320, %v313, %v317
    %v322 = vand.u32 2147483647, %v312
    %vm323 = vcmp.eq.f32.partialorder %v322, 8.507059e+37
    %v324 = vand.u32 %v312, 2147483648
    %v325 = vor.u32 1.1754944e-38, %v324
    %v326 = vsel %vm323, %v325, %v321
    %v327 = vmul.f32 1.0, %v326
    %v328 = vtanh.pop %v308
    %v330 = vrot.slane %v272, 6
    %v332 = vmul.f32 %v327, %v330
    %334 = vrot.lane.b32.xlu0 %v328, 64
    %v335 = vpop.permute.xlu0 %334
    %v337 = vmul.f32 %v327, %v335
    %339 = vrot.lane.b32.xlu0 %v337, 32
    %v340 = vpop.permute.xlu0 %339
    %v342 = vadd.f32 %v332, %v340
    %v343 = vtanh.pop %v342
    %345 = vrot.lane.b32.xlu0 %v343, 64
    %v346 = vpop.permute.xlu0 %345
    %v348 = vmul.f32 %v327, %v346
    %v350 = vrot.slane %v348, 4
    %351 = vrot.lane.b32.xlu0 %v350, 32
    %v352 = vpop.permute.xlu0 %351
    %v353 = vsel %vm148, %v352, 0
    %355 = vmatpush.msra.mxu0 0.0
    %356 = vmatpush.msra.mxu0 0.0
    %357 = vmatpush.msra.mxu0 0.0
    %358 = vmatpush.msra.mxu0 0.0
    %359 = vmatpush.msra.mxu0 0.0
    %360 = vmatpush.msra.mxu0 0.0
    %361 = vmatpush.msra.mxu0 0.0
    %362 = vmatpush.msra.mxu0 0.0
    %363 = vmatpush.msra.mxu0 0.0
    %364 = vmatpush.msra.mxu0 0.0
    %365 = vmatpush.msra.mxu0 0.0
    %366 = vmatpush.msra.mxu0 0.0
    %367 = vmatpush.msra.mxu0 %v119
    %368 = vmatpush.msra.mxu0 %v118
    %369 = vmatpush.msra.mxu0 %v117
    %370 = vmatpush.msra.mxu0 %v116
    %371 = vmatmul.f32.gmra.mxu0 %v353
    %v372 = vpop.f32.mrf.mxu0
    %v373 = vadd.f32 0.0, %v372
    %374 = vdwg.mxu0
    %v376 = vrot.slane %v373, 2
    %v378 = vadd.f32 %v146, %v376
    %v379 = vxor.u32 %v378, 2147483648
    %v380 = vmul.f32 %v379, 1.442695
    %v381 = vpow.pop %v380
    %v382 = vadd.f32 %v381, 1.0
    %v383 = vrcp.pop %v382
    %v384 = vmul.f32 %v382, %v383
    %v385 = vsub.f32 1.0, %v384
    %v386 = vmul.f32 %v383, %v385
    %v387 = vadd.f32 %v383, %v386
    %vm388 = vweird.f32 %v382
    %vm389 = vweird.f32 %v383
    %vm390 = vmor %vm388, %vm389
    %v391 = vsel %vm390, %v383, %v387
    %v392 = vand.u32 2147483647, %v382
    %vm393 = vcmp.eq.f32.partialorder %v392, 8.507059e+37
    %v394 = vand.u32 %v382, 2147483648
    %v395 = vor.u32 1.1754944e-38, %v394
    %v396 = vsel %vm393, %v395, %v391
    %v397 = vmul.f32 1.0, %v396
    %v398 = vtanh.pop %v378
    %v400 = vrot.slane %v342, 6
    %v402 = vmul.f32 %v397, %v400
    %404 = vrot.lane.b32.xlu0 %v398, 64
    %v405 = vpop.permute.xlu0 %404
    %v407 = vmul.f32 %v397, %v405
    %409 = vrot.lane.b32.xlu0 %v407, 32
    %v410 = vpop.permute.xlu0 %409
    %v412 = vadd.f32 %v402, %v410
    %v413 = vtanh.pop %v412
    %415 = vrot.lane.b32.xlu0 %v413, 64
    %v416 = vpop.permute.xlu0 %415
    %v418 = vmul.f32 %v397, %v416
    %vm419 = vcmask 1041408
    %v420 = vsel %vm419, %v209, %v278
    %vm421 = vcmask 1043456
    %v422 = vsel %vm421, %v420, %v348
    %vm423 = vcmask 1045504
    %v424 = vsel %vm423, %v422, %v418
    %v425 = vld [vmem:[#allocation7] sm:$0xff]
    %v426 = vld [vmem:[#allocation7 + $0x8] sm:$0xff]
    %v427 = vld [vmem:[#allocation7 + $0x10] sm:$0xff]
    %v428 = vld [vmem:[#allocation7 + $0x18] sm:$0xff]
    %v429 = vld [vmem:[#allocation8] sm:$0xff]
    %v430 = vld [vmem:[#allocation8 + $0x8] sm:$0xff]
    %v431 = vld [vmem:[#allocation8 + $0x10] sm:$0xff]
    %v432 = vld [vmem:[#allocation8 + $0x18] sm:$0xff]
    %v433 = vld [vmem:[%s6] sm:$0x1]
    %v435 = vperm.slane %v433, 0
    %438 = vrot.lane.b32.xlu0 %v424, 32
    %v439 = vpop.permute.xlu0 %438
    %v440 = vsel %vm148, %v439, 0
    %442 = vmatpush.msra.mxu0 0.0
    %443 = vmatpush.msra.mxu0 0.0
    %444 = vmatpush.msra.mxu0 0.0
    %445 = vmatpush.msra.mxu0 0.0
    %446 = vmatpush.msra.mxu0 0.0
    %447 = vmatpush.msra.mxu0 0.0
    %448 = vmatpush.msra.mxu0 0.0
    %449 = vmatpush.msra.mxu0 0.0
    %450 = vmatpush.msra.mxu0 0.0
    %451 = vmatpush.msra.mxu0 0.0
    %452 = vmatpush.msra.mxu0 0.0
    %453 = vmatpush.msra.mxu0 0.0
    %454 = vmatpush.msra.mxu0 %v428
    %455 = vmatpush.msra.mxu0 %v427
    %456 = vmatpush.msra.mxu0 %v426
    %457 = vmatpush.msra.mxu0 %v425
    %458 = vmatmul.f32.gmra.mxu0 %v440
    %v459 = vpop.f32.mrf.mxu0
    %v460 = vadd.f32 %v435, %v459
    %461 = vdwg.mxu0
    %462 = vmatpush.msra.mxu0 0.0
    %463 = vmatpush.msra.mxu0 0.0
    %464 = vmatpush.msra.mxu0 0.0
    %465 = vmatpush.msra.mxu0 0.0
    %466 = vmatpush.msra.mxu0 0.0
    %467 = vmatpush.msra.mxu0 0.0
    %468 = vmatpush.msra.mxu0 0.0
    %469 = vmatpush.msra.mxu0 0.0
    %470 = vmatpush.msra.mxu0 0.0
    %471 = vmatpush.msra.mxu0 0.0
    %472 = vmatpush.msra.mxu0 0.0
    %473 = vmatpush.msra.mxu0 0.0
    %474 = vmatpush.msra.mxu0 %v432
    %475 = vmatpush.msra.mxu0 %v431
    %476 = vmatpush.msra.mxu0 %v430
    %477 = vmatpush.msra.mxu0 %v429
    %478 = vmatmul.f32.gmra.mxu0 %v150
    %v479 = vpop.f32.mrf.mxu0
    %v480 = vadd.f32 0.0, %v479
    %481 = vdwg.mxu0
    %v482 = vadd.f32 %v460, %v480
    %v483 = vxor.u32 %v482, 2147483648
    %v484 = vmul.f32 %v483, 1.442695
    %v485 = vpow.pop %v484
    %v486 = vadd.f32 %v485, 1.0
    %v487 = vrcp.pop %v486
    %v488 = vmul.f32 %v486, %v487
    %v489 = vsub.f32 1.0, %v488
    %v490 = vmul.f32 %v487, %v489
    %v491 = vadd.f32 %v487, %v490
    %vm492 = vweird.f32 %v486
    %vm493 = vweird.f32 %v487
    %vm494 = vmor %vm492, %vm493
    %v495 = vsel %vm494, %v487, %v491
    %v496 = vand.u32 2147483647, %v486
    %vm497 = vcmp.eq.f32.partialorder %v496, 8.507059e+37
    %v498 = vand.u32 %v486, 2147483648
    %v499 = vor.u32 1.1754944e-38, %v498
    %v500 = vsel %vm497, %v499, %v495
    %v501 = vmul.f32 1.0, %v500
    %v502 = vtanh.pop %v482
    %v503 = vmul.f32 %v501, 0.0
    %505 = vrot.lane.b32.xlu0 %v502, 64
    %v506 = vpop.permute.xlu0 %505
    %v508 = vmul.f32 %v501, %v506
    %510 = vrot.lane.b32.xlu0 %v508, 32
    %v511 = vpop.permute.xlu0 %510
    %v513 = vadd.f32 %v503, %v511
    %v514 = vtanh.pop %v513
    %516 = vrot.lane.b32.xlu0 %v514, 64
    %v517 = vpop.permute.xlu0 %516
    %v519 = vmul.f32 %v501, %v517
    %521 = vrot.lane.b32.xlu0 %v519, 32
    %v522 = vpop.permute.xlu0 %521
    %v523 = vsel %vm148, %v522, 0
    %525 = vmatpush.msra.mxu0 0.0
    %526 = vmatpush.msra.mxu0 0.0
    %527 = vmatpush.msra.mxu0 0.0
    %528 = vmatpush.msra.mxu0 0.0
    %529 = vmatpush.msra.mxu0 0.0
    %530 = vmatpush.msra.mxu0 0.0
    %531 = vmatpush.msra.mxu0 0.0
    %532 = vmatpush.msra.mxu0 0.0
    %533 = vmatpush.msra.mxu0 0.0
    %534 = vmatpush.msra.mxu0 0.0
    %535 = vmatpush.msra.mxu0 0.0
    %536 = vmatpush.msra.mxu0 0.0
    %537 = vmatpush.msra.mxu0 %v432
    %538 = vmatpush.msra.mxu0 %v431
    %539 = vmatpush.msra.mxu0 %v430
    %540 = vmatpush.msra.mxu0 %v429
    %541 = vmatmul.f32.gmra.mxu0 %v523
    %v542 = vpop.f32.mrf.mxu0
    %v543 = vadd.f32 0.0, %v542
    %544 = vdwg.mxu0
    %v546 = vrot.slane %v543, 6
    %v548 = vadd.f32 %v460, %v546
    %v549 = vxor.u32 %v548, 2147483648
    %v550 = vmul.f32 %v549, 1.442695
    %v551 = vpow.pop %v550
    %v552 = vadd.f32 %v551, 1.0
    %v553 = vrcp.pop %v552
    %v554 = vmul.f32 %v552, %v553
    %v555 = vsub.f32 1.0, %v554
    %v556 = vmul.f32 %v553, %v555
    %v557 = vadd.f32 %v553, %v556
    %vm558 = vweird.f32 %v552
    %vm559 = vweird.f32 %v553
    %vm560 = vmor %vm558, %vm559
    %v561 = vsel %vm560, %v553, %v557
    %v562 = vand.u32 2147483647, %v552
    %vm563 = vcmp.eq.f32.partialorder %v562, 8.507059e+37
    %v564 = vand.u32 %v552, 2147483648
    %v565 = vor.u32 1.1754944e-38, %v564
    %v566 = vsel %vm563, %v565, %v561
    %v567 = vmul.f32 1.0, %v566
    %v568 = vtanh.pop %v548
    %v570 = vrot.slane %v513, 6
    %v572 = vmul.f32 %v567, %v570
    %574 = vrot.lane.b32.xlu0 %v568, 64
    %v575 = vpop.permute.xlu0 %574
    %v577 = vmul.f32 %v567, %v575
    %579 = vrot.lane.b32.xlu0 %v577, 32
    %v580 = vpop.permute.xlu0 %579
    %v582 = vadd.f32 %v572, %v580
    %v583 = vtanh.pop %v582
    %585 = vrot.lane.b32.xlu0 %v583, 64
    %v586 = vpop.permute.xlu0 %585
    %v588 = vmul.f32 %v567, %v586
    %v590 = vrot.slane %v588, 2
    %591 = vrot.lane.b32.xlu0 %v590, 32
    %v592 = vpop.permute.xlu0 %591
    %v593 = vsel %vm148, %v592, 0
    %595 = vmatpush.msra.mxu0 0.0
    %596 = vmatpush.msra.mxu0 0.0
    %597 = vmatpush.msra.mxu0 0.0
    %598 = vmatpush.msra.mxu0 0.0
    %599 = vmatpush.msra.mxu0 0.0
    %600 = vmatpush.msra.mxu0 0.0
    %601 = vmatpush.msra.mxu0 0.0
    %602 = vmatpush.msra.mxu0 0.0
    %603 = vmatpush.msra.mxu0 0.0
    %604 = vmatpush.msra.mxu0 0.0
    %605 = vmatpush.msra.mxu0 0.0
    %606 = vmatpush.msra.mxu0 0.0
    %607 = vmatpush.msra.mxu0 %v432
    %608 = vmatpush.msra.mxu0 %v431
    %609 = vmatpush.msra.mxu0 %v430
    %610 = vmatpush.msra.mxu0 %v429
    %611 = vmatmul.f32.gmra.mxu0 %v593
    %v612 = vpop.f32.mrf.mxu0
    %v613 = vadd.f32 0.0, %v612
    %614 = vdwg.mxu0
    %v616 = vrot.slane %v613, 4
    %v618 = vadd.f32 %v460, %v616
    %v619 = vxor.u32 %v618, 2147483648
    %v620 = vmul.f32 %v619, 1.442695
    %v621 = vpow.pop %v620
    %v622 = vadd.f32 %v621, 1.0
    %v623 = vrcp.pop %v622
    %v624 = vmul.f32 %v622, %v623
    %v625 = vsub.f32 1.0, %v624
    %v626 = vmul.f32 %v623, %v625
    %v627 = vadd.f32 %v623, %v626
    %vm628 = vweird.f32 %v622
    %vm629 = vweird.f32 %v623
    %vm630 = vmor %vm628, %vm629
    %v631 = vsel %vm630, %v623, %v627
    %v632 = vand.u32 2147483647, %v622
    %vm633 = vcmp.eq.f32.partialorder %v632, 8.507059e+37
    %v634 = vand.u32 %v622, 2147483648
    %v635 = vor.u32 1.1754944e-38, %v634
    %v636 = vsel %vm633, %v635, %v631
    %v637 = vmul.f32 1.0, %v636
    %v638 = vtanh.pop %v618
    %v640 = vrot.slane %v582, 6
    %v642 = vmul.f32 %v637, %v640
    %644 = vrot.lane.b32.xlu0 %v638, 64
    %v645 = vpop.permute.xlu0 %644
    %v647 = vmul.f32 %v637, %v645
    %649 = vrot.lane.b32.xlu0 %v647, 32
    %v650 = vpop.permute.xlu0 %649
    %v652 = vadd.f32 %v642, %v650
    %v653 = vtanh.pop %v652
    %655 = vrot.lane.b32.xlu0 %v653, 64
    %v656 = vpop.permute.xlu0 %655
    %v658 = vmul.f32 %v637, %v656
    %v660 = vrot.slane %v658, 4
    %661 = vrot.lane.b32.xlu0 %v660, 32
    %v662 = vpop.permute.xlu0 %661
    %v663 = vsel %vm148, %v662, 0
    %665 = vmatpush.msra.mxu0 0.0
    %666 = vmatpush.msra.mxu0 0.0
    %667 = vmatpush.msra.mxu0 0.0
    %668 = vmatpush.msra.mxu0 0.0
    %669 = vmatpush.msra.mxu0 0.0
    %670 = vmatpush.msra.mxu0 0.0
    %671 = vmatpush.msra.mxu0 0.0
    %672 = vmatpush.msra.mxu0 0.0
    %673 = vmatpush.msra.mxu0 0.0
    %674 = vmatpush.msra.mxu0 0.0
    %675 = vmatpush.msra.mxu0 0.0
    %676 = vmatpush.msra.mxu0 0.0
    %677 = vmatpush.msra.mxu0 %v432
    %678 = vmatpush.msra.mxu0 %v431
    %679 = vmatpush.msra.mxu0 %v430
    %680 = vmatpush.msra.mxu0 %v429
    %681 = vmatmul.f32.gmra.mxu0 %v663
    %v682 = vpop.f32.mrf.mxu0
    %v683 = vadd.f32 0.0, %v682
    %684 = vdwg.mxu0
    %v686 = vrot.slane %v683, 2
    %v688 = vadd.f32 %v460, %v686
    %v689 = vxor.u32 %v688, 2147483648
    %v690 = vmul.f32 %v689, 1.442695
    %v691 = vpow.pop %v690
    %v692 = vadd.f32 %v691, 1.0
    %v693 = vrcp.pop %v692
    %v694 = vmul.f32 %v692, %v693
    %v695 = vsub.f32 1.0, %v694
    %v696 = vmul.f32 %v693, %v695
    %v697 = vadd.f32 %v693, %v696
    %vm698 = vweird.f32 %v692
    %vm699 = vweird.f32 %v693
    %vm700 = vmor %vm698, %vm699
    %v701 = vsel %vm700, %v693, %v697
    %v702 = vand.u32 2147483647, %v692
    %vm703 = vcmp.eq.f32.partialorder %v702, 8.507059e+37
    %v704 = vand.u32 %v692, 2147483648
    %v705 = vor.u32 1.1754944e-38, %v704
    %v706 = vsel %vm703, %v705, %v701
    %v707 = vmul.f32 1.0, %v706
    %v708 = vtanh.pop %v688
    %v710 = vrot.slane %v652, 6
    %v712 = vmul.f32 %v707, %v710
    %714 = vrot.lane.b32.xlu0 %v708, 64
    %v715 = vpop.permute.xlu0 %714
    %v717 = vmul.f32 %v707, %v715
    %719 = vrot.lane.b32.xlu0 %v717, 32
    %v720 = vpop.permute.xlu0 %719
    %v722 = vadd.f32 %v712, %v720
    %v723 = vtanh.pop %v722
    %725 = vrot.lane.b32.xlu0 %v723, 64
    %v726 = vpop.permute.xlu0 %725
    %v728 = vmul.f32 %v707, %v726
    %730 = vrot.lane.b32.xlu0 %v590, 64
    %v731 = vpop.permute.xlu0 %730
    %733 = vrot.lane.b32.xlu0 %v660, 96
    %v734 = vpop.permute.xlu0 %733
    %v737 = vrot.slane %v728, 6
    %v739 = vsel %vm148, %v522, %v731
    %vm740 = vcmask 523264
    %v741 = vsel %vm740, %v739, %v734
    %vm742 = vcmask 785408
    %v743 = vsel %vm742, %v741, %v737
    %v744 = vpack.c.bf16 %v743, %v743
    %v745 = vld [vmem:[%s7] sm:$0xff]
    %v746 = vld [vmem:[%s7 + $0x8] sm:$0xff]
    %v747 = vld [vmem:[%s7 + $0x10] sm:$0xff]
    %v748 = vld [vmem:[%s7 + $0x18] sm:$0xff]
    %v749 = vld [vmem:[%s7 + $0x20] sm:$0xff]
    %v750 = vld [vmem:[%s7 + $0x28] sm:$0xff]
    %v751 = vld [vmem:[%s7 + $0x30] sm:$0xff]
    %v752 = vld [vmem:[%s7 + $0x38] sm:$0xff]
    %v753 = vld [vmem:[%s7 + $0x40] sm:$0xff]
    %v754 = vld [vmem:[%s7 + $0x48] sm:$0xff]
    %v755 = vld [vmem:[%s7 + $0x50] sm:$0xff]
    %v756 = vld [vmem:[%s7 + $0x58] sm:$0xff]
    %v757 = vld [vmem:[%s7 + $0x60] sm:$0xff]
    %v758 = vld [vmem:[%s7 + $0x68] sm:$0xff]
    %v759 = vld [vmem:[%s7 + $0x70] sm:$0xff]
    %v760 = vld [vmem:[%s7 + $0x78] sm:$0xff]
    %v761 = vld [vmem:[%s7 + $0x80] sm:$0xff]
    %v762 = vld [vmem:[%s7 + $0x88] sm:$0xff]
    %v763 = vld [vmem:[%s7 + $0x90] sm:$0xff]
    %v764 = vld [vmem:[%s7 + $0x98] sm:$0xff]
    %v765 = vld [vmem:[%s7 + $0xa0] sm:$0xff]
    %v766 = vld [vmem:[%s7 + $0xa8] sm:$0xff]
    %v767 = vld [vmem:[%s7 + $0xb0] sm:$0xff]
    %v768 = vld [vmem:[%s7 + $0xb8] sm:$0xff]
    %v769 = vld [vmem:[%s7 + $0xc0] sm:$0xff]
    %v770 = vld [vmem:[%s7 + $0xc8] sm:$0xff]
    %v771 = vld [vmem:[%s7 + $0xd0] sm:$0xff]
    %v772 = vld [vmem:[%s7 + $0xd8] sm:$0xff]
    %v773 = vld [vmem:[%s7 + $0xe0] sm:$0xff]
    %v774 = vld [vmem:[%s7 + $0xe8] sm:$0xff]
    %v775 = vld [vmem:[%s7 + $0xf0] sm:$0xff]
    %v776 = vld [vmem:[%s7 + $0xf8] sm:$0xff]
    %v777 = vld [vmem:[%s7 + $0x100] sm:$0xff]
    %v778 = vld [vmem:[%s7 + $0x108] sm:$0xff]
    %v779 = vld [vmem:[%s7 + $0x110] sm:$0xff]
    %v780 = vld [vmem:[%s7 + $0x118] sm:$0xff]
    %v781 = vld [vmem:[%s7 + $0x120] sm:$0xff]
    %v782 = vld [vmem:[%s7 + $0x128] sm:$0xff]
    %v783 = vld [vmem:[%s7 + $0x130] sm:$0xff]
    %v784 = vld [vmem:[%s7 + $0x138] sm:$0xff]
    %v785 = vld [vmem:[%s7 + $0x140] sm:$0xff]
    %v786 = vld [vmem:[%s7 + $0x148] sm:$0xff]
    %v787 = vld [vmem:[%s7 + $0x150] sm:$0xff]
    %v788 = vld [vmem:[%s7 + $0x158] sm:$0xff]
    %v789 = vld [vmem:[%s7 + $0x160] sm:$0xff]
    %v790 = vld [vmem:[%s7 + $0x168] sm:$0xff]
    %v791 = vld [vmem:[%s7 + $0x170] sm:$0xff]
    %v792 = vld [vmem:[%s7 + $0x178] sm:$0xff]
    %v793 = vld [vmem:[%s7 + $0x180] sm:$0xff]
    %v794 = vld [vmem:[%s7 + $0x188] sm:$0xff]
    %v795 = vld [vmem:[%s7 + $0x190] sm:$0xff]
    %v796 = vld [vmem:[%s7 + $0x198] sm:$0xff]
    %v797 = vld [vmem:[%s7 + $0x1a0] sm:$0xff]
    %v798 = vld [vmem:[%s7 + $0x1a8] sm:$0xff]
    %v799 = vld [vmem:[%s7 + $0x1b0] sm:$0xff]
    %v800 = vld [vmem:[%s7 + $0x1b8] sm:$0xff]
    %v801 = vld [vmem:[%s7 + $0x1c0] sm:$0xff]
    %v802 = vld [vmem:[%s7 + $0x1c8] sm:$0xff]
    %v803 = vld [vmem:[%s7 + $0x1d0] sm:$0xff]
    %v804 = vld [vmem:[%s7 + $0x1d8] sm:$0xff]
    %v805 = vld [vmem:[%s7 + $0x1e0] sm:$0xff]
    %v806 = vld [vmem:[%s7 + $0x1e8] sm:$0xff]
    %v807 = vld [vmem:[%s7 + $0x1f0] sm:$0xff]
    %v808 = vld [vmem:[%s7 + $0x1f8] sm:$0xff]
    %v809 = vld [vmem:[#allocation10] sm:$0xff]
    %v811 = vperm.slane %v809, 0
    %v812 = vperm.slane %v809, 1
    %v813 = vperm.slane %v809, 2
    %v814 = vperm.slane %v809, 3
    %v815 = vperm.slane %v809, 4
    %v816 = vperm.slane %v809, 5
    %v817 = vperm.slane %v809, 6
    %v818 = vperm.slane %v809, 7
    %v891 = vunpack.c.l.b16 %v745
    %v892 = vunpack.c.h.b16 %v745
    %v893 = vunpack.c.l.b16 %v746
    %v894 = vunpack.c.h.b16 %v746
    %v895 = vunpack.c.l.b16 %v747
    %v896 = vunpack.c.h.b16 %v747
    %v897 = vunpack.c.l.b16 %v748
    %v898 = vunpack.c.h.b16 %v748
    %v899 = vunpack.c.l.b16 %v749
    %v900 = vunpack.c.h.b16 %v749
    %v901 = vunpack.c.l.b16 %v750
    %v902 = vunpack.c.h.b16 %v750
    %v903 = vunpack.c.l.b16 %v751
    %v904 = vunpack.c.h.b16 %v751
    %v905 = vunpack.c.l.b16 %v752
    %v906 = vunpack.c.h.b16 %v752
    %v907 = vunpack.c.l.b16 %v753
    %v908 = vunpack.c.h.b16 %v753
    %v909 = vunpack.c.l.b16 %v754
    %v910 = vunpack.c.h.b16 %v754
    %v911 = vunpack.c.l.b16 %v755
    %v912 = vunpack.c.h.b16 %v755
    %v913 = vunpack.c.l.b16 %v756
    %v914 = vunpack.c.h.b16 %v756
    %v915 = vunpack.c.l.b16 %v757
    %v916 = vunpack.c.h.b16 %v757
    %v917 = vunpack.c.l.b16 %v758
    %v918 = vunpack.c.h.b16 %v758
    %v919 = vunpack.c.l.b16 %v759
    %v920 = vunpack.c.h.b16 %v759
    %v921 = vunpack.c.l.b16 %v760
    %v922 = vunpack.c.h.b16 %v760
    %v923 = vunpack.c.l.b16 %v761
    %v924 = vunpack.c.h.b16 %v761
    %v925 = vunpack.c.l.b16 %v762
    %v926 = vunpack.c.h.b16 %v762
    %v927 = vunpack.c.l.b16 %v763
    %v928 = vunpack.c.h.b16 %v763
    %v929 = vunpack.c.l.b16 %v764
    %v930 = vunpack.c.h.b16 %v764
    %v931 = vunpack.c.l.b16 %v765
    %v932 = vunpack.c.h.b16 %v765
    %v933 = vunpack.c.l.b16 %v766
    %v934 = vunpack.c.h.b16 %v766
    %v935 = vunpack.c.l.b16 %v767
    %v936 = vunpack.c.h.b16 %v767
    %v937 = vunpack.c.l.b16 %v768
    %v938 = vunpack.c.h.b16 %v768
    %v939 = vunpack.c.l.b16 %v769
    %v940 = vunpack.c.h.b16 %v769
    %v941 = vunpack.c.l.b16 %v770
    %v942 = vunpack.c.h.b16 %v770
    %v943 = vunpack.c.l.b16 %v771
    %v944 = vunpack.c.h.b16 %v771
    %v945 = vunpack.c.l.b16 %v772
    %v946 = vunpack.c.h.b16 %v772
    %v947 = vunpack.c.l.b16 %v773
    %v948 = vunpack.c.h.b16 %v773
    %v949 = vunpack.c.l.b16 %v774
    %v950 = vunpack.c.h.b16 %v774
    %v951 = vunpack.c.l.b16 %v775
    %v952 = vunpack.c.h.b16 %v775
    %v953 = vunpack.c.l.b16 %v776
    %v954 = vunpack.c.h.b16 %v776
    %v955 = vunpack.c.l.b16 %v777
    %v956 = vunpack.c.h.b16 %v777
    %v957 = vunpack.c.l.b16 %v778
    %v958 = vunpack.c.h.b16 %v778
    %v959 = vunpack.c.l.b16 %v779
    %v960 = vunpack.c.h.b16 %v779
    %v961 = vunpack.c.l.b16 %v780
    %v962 = vunpack.c.h.b16 %v780
    %v963 = vunpack.c.l.b16 %v781
    %v964 = vunpack.c.h.b16 %v781
    %v965 = vunpack.c.l.b16 %v782
    %v966 = vunpack.c.h.b16 %v782
    %v967 = vunpack.c.l.b16 %v783
    %v968 = vunpack.c.h.b16 %v783
    %v969 = vunpack.c.l.b16 %v784
    %v970 = vunpack.c.h.b16 %v784
    %v971 = vunpack.c.l.b16 %v785
    %v972 = vunpack.c.h.b16 %v785
    %v973 = vunpack.c.l.b16 %v786
    %v974 = vunpack.c.h.b16 %v786
    %v975 = vunpack.c.l.b16 %v787
    %v976 = vunpack.c.h.b16 %v787
    %v977 = vunpack.c.l.b16 %v788
    %v978 = vunpack.c.h.b16 %v788
    %v979 = vunpack.c.l.b16 %v789
    %v980 = vunpack.c.h.b16 %v789
    %v981 = vunpack.c.l.b16 %v790
    %v982 = vunpack.c.h.b16 %v790
    %v983 = vunpack.c.l.b16 %v791
    %v984 = vunpack.c.h.b16 %v791
    %v985 = vunpack.c.l.b16 %v792
    %v986 = vunpack.c.h.b16 %v792
    %v987 = vunpack.c.l.b16 %v793
    %v988 = vunpack.c.h.b16 %v793
    %v989 = vunpack.c.l.b16 %v794
    %v990 = vunpack.c.h.b16 %v794
    %v991 = vunpack.c.l.b16 %v795
    %v992 = vunpack.c.h.b16 %v795
    %v993 = vunpack.c.l.b16 %v796
    %v994 = vunpack.c.h.b16 %v796
    %v995 = vunpack.c.l.b16 %v797
    %v996 = vunpack.c.h.b16 %v797
    %v997 = vunpack.c.l.b16 %v798
    %v998 = vunpack.c.h.b16 %v798
    %v999 = vunpack.c.l.b16 %v799
    %v1000 = vunpack.c.h.b16 %v799
    %v1001 = vunpack.c.l.b16 %v800
    %v1002 = vunpack.c.h.b16 %v800
    %v1003 = vunpack.c.l.b16 %v801
    %v1004 = vunpack.c.h.b16 %v801
    %v1005 = vunpack.c.l.b16 %v802
    %v1006 = vunpack.c.h.b16 %v802
    %v1007 = vunpack.c.l.b16 %v803
    %v1008 = vunpack.c.h.b16 %v803
    %v1009 = vunpack.c.l.b16 %v804
    %v1010 = vunpack.c.h.b16 %v804
    %v1011 = vunpack.c.l.b16 %v805
    %v1012 = vunpack.c.h.b16 %v805
    %v1013 = vunpack.c.l.b16 %v806
    %v1014 = vunpack.c.h.b16 %v806
    %v1015 = vunpack.c.l.b16 %v807
    %v1016 = vunpack.c.h.b16 %v807
    %v1017 = vunpack.c.l.b16 %v808
    %v1018 = vunpack.c.h.b16 %v808
    %v1019 = vpack.c.b16 %v899, %v891
    %v1020 = vpack.c.b16 %v900, %v892
    %v1021 = vpack.c.b16 %v901, %v893
    %v1022 = vpack.c.b16 %v902, %v894
    %v1023 = vpack.c.b16 %v903, %v895
    %v1024 = vpack.c.b16 %v904, %v896
    %v1025 = vpack.c.b16 %v905, %v897
    %v1026 = vpack.c.b16 %v906, %v898
    %v1027 = vpack.c.b16 %v915, %v907
    %v1028 = vpack.c.b16 %v916, %v908
    %v1029 = vpack.c.b16 %v917, %v909
    %v1030 = vpack.c.b16 %v918, %v910
    %v1031 = vpack.c.b16 %v919, %v911
    %v1032 = vpack.c.b16 %v920, %v912
    %v1033 = vpack.c.b16 %v921, %v913
    %v1034 = vpack.c.b16 %v922, %v914
    %v1035 = vpack.c.b16 %v931, %v923
    %v1036 = vpack.c.b16 %v932, %v924
    %v1037 = vpack.c.b16 %v933, %v925
    %v1038 = vpack.c.b16 %v934, %v926
    %v1039 = vpack.c.b16 %v935, %v927
    %v1040 = vpack.c.b16 %v936, %v928
    %v1041 = vpack.c.b16 %v937, %v929
    %v1042 = vpack.c.b16 %v938, %v930
    %v1043 = vpack.c.b16 %v947, %v939
    %v1044 = vpack.c.b16 %v948, %v940
    %v1045 = vpack.c.b16 %v949, %v941
    %v1046 = vpack.c.b16 %v950, %v942
    %v1047 = vpack.c.b16 %v951, %v943
    %v1048 = vpack.c.b16 %v952, %v944
    %v1049 = vpack.c.b16 %v953, %v945
    %v1050 = vpack.c.b16 %v954, %v946
    %v1051 = vpack.c.b16 %v963, %v955
    %v1052 = vpack.c.b16 %v964, %v956
    %v1053 = vpack.c.b16 %v965, %v957
    %v1054 = vpack.c.b16 %v966, %v958
    %v1055 = vpack.c.b16 %v967, %v959
    %v1056 = vpack.c.b16 %v968, %v960
    %v1057 = vpack.c.b16 %v969, %v961
    %v1058 = vpack.c.b16 %v970, %v962
    %v1059 = vpack.c.b16 %v979, %v971
    %v1060 = vpack.c.b16 %v980, %v972
    %v1061 = vpack.c.b16 %v981, %v973
    %v1062 = vpack.c.b16 %v982, %v974
    %v1063 = vpack.c.b16 %v983, %v975
    %v1064 = vpack.c.b16 %v984, %v976
    %v1065 = vpack.c.b16 %v985, %v977
    %v1066 = vpack.c.b16 %v986, %v978
    %v1067 = vpack.c.b16 %v995, %v987
    %v1068 = vpack.c.b16 %v996, %v988
    %v1069 = vpack.c.b16 %v997, %v989
    %v1070 = vpack.c.b16 %v998, %v990
    %v1071 = vpack.c.b16 %v999, %v991
    %v1072 = vpack.c.b16 %v1000, %v992
    %v1073 = vpack.c.b16 %v1001, %v993
    %v1074 = vpack.c.b16 %v1002, %v994
    %v1075 = vpack.c.b16 %v1011, %v1003
    %v1076 = vpack.c.b16 %v1012, %v1004
    %v1077 = vpack.c.b16 %v1013, %v1005
    %v1078 = vpack.c.b16 %v1014, %v1006
    %v1079 = vpack.c.b16 %v1015, %v1007
    %v1080 = vpack.c.b16 %v1016, %v1008
    %v1081 = vpack.c.b16 %v1017, %v1009
    %v1082 = vpack.c.b16 %v1018, %v1010
    %1147 = vmatpush.bf16.msra.mxu0 %v1075
    %1148 = vmatpush.bf16.msra.mxu0 %v1067
    %1149 = vmatpush.bf16.msra.mxu0 %v1059
    %1150 = vmatpush.bf16.msra.mxu0 %v1051
    %1151 = vmatpush.bf16.msra.mxu0 %v1043
    %1152 = vmatpush.bf16.msra.mxu0 %v1035
    %1153 = vmatpush.bf16.msra.mxu0 %v1027
    %1154 = vmatpush.bf16.msra.mxu0 %v1019
    %1155 = vmatmul.bf16.gmra.mxu0 %v744
    %v1156 = vpop.f32.mrf.mxu0
    %v1157 = vadd.f32 %v811, %v1156
    %v1158 = vpop.f32.mrf.mxu0
    %1159 = vdwg.mxu0
    %1160 = vmatpush.bf16.msra.mxu0 %v1076
    %1161 = vmatpush.bf16.msra.mxu0 %v1068
    %1162 = vmatpush.bf16.msra.mxu0 %v1060
    %1163 = vmatpush.bf16.msra.mxu0 %v1052
    %1164 = vmatpush.bf16.msra.mxu0 %v1044
    %1165 = vmatpush.bf16.msra.mxu0 %v1036
    %1166 = vmatpush.bf16.msra.mxu0 %v1028
    %1167 = vmatpush.bf16.msra.mxu0 %v1020
    %1168 = vmatmul.bf16.gmra.mxu0 %v744
    %v1169 = vpop.f32.mrf.mxu0
    %v1170 = vadd.f32 %v812, %v1169
    %v1171 = vpop.f32.mrf.mxu0
    %1172 = vdwg.mxu0
    %1173 = vmatpush.bf16.msra.mxu0 %v1077
    %1174 = vmatpush.bf16.msra.mxu0 %v1069
    %1175 = vmatpush.bf16.msra.mxu0 %v1061
    %1176 = vmatpush.bf16.msra.mxu0 %v1053
    %1177 = vmatpush.bf16.msra.mxu0 %v1045
    %1178 = vmatpush.bf16.msra.mxu0 %v1037
    %1179 = vmatpush.bf16.msra.mxu0 %v1029
    %1180 = vmatpush.bf16.msra.mxu0 %v1021
    %1181 = vmatmul.bf16.gmra.mxu0 %v744
    %v1182 = vpop.f32.mrf.mxu0
    %v1183 = vadd.f32 %v813, %v1182
    %v1184 = vpop.f32.mrf.mxu0
    %1185 = vdwg.mxu0
    %1186 = vmatpush.bf16.msra.mxu0 %v1078
    %1187 = vmatpush.bf16.msra.mxu0 %v1070
    %1188 = vmatpush.bf16.msra.mxu0 %v1062
    %1189 = vmatpush.bf16.msra.mxu0 %v1054
    %1190 = vmatpush.bf16.msra.mxu0 %v1046
    %1191 = vmatpush.bf16.msra.mxu0 %v1038
    %1192 = vmatpush.bf16.msra.mxu0 %v1030
    %1193 = vmatpush.bf16.msra.mxu0 %v1022
    %1194 = vmatmul.bf16.gmra.mxu0 %v744
    %v1195 = vpop.f32.mrf.mxu0
    %v1196 = vadd.f32 %v814, %v1195
    %v1197 = vpop.f32.mrf.mxu0
    %1198 = vdwg.mxu0
    %1199 = vmatpush.bf16.msra.mxu0 %v1079
    %1200 = vmatpush.bf16.msra.mxu0 %v1071
    %1201 = vmatpush.bf16.msra.mxu0 %v1063
    %1202 = vmatpush.bf16.msra.mxu0 %v1055
    %1203 = vmatpush.bf16.msra.mxu0 %v1047
    %1204 = vmatpush.bf16.msra.mxu0 %v1039
    %1205 = vmatpush.bf16.msra.mxu0 %v1031
    %1206 = vmatpush.bf16.msra.mxu0 %v1023
    %1207 = vmatmul.bf16.gmra.mxu0 %v744
    %v1208 = vpop.f32.mrf.mxu0
    %v1209 = vadd.f32 %v815, %v1208
    %v1210 = vpop.f32.mrf.mxu0
    %1211 = vdwg.mxu0
    %1212 = vmatpush.bf16.msra.mxu0 %v1080
    %1213 = vmatpush.bf16.msra.mxu0 %v1072
    %1214 = vmatpush.bf16.msra.mxu0 %v1064
    %1215 = vmatpush.bf16.msra.mxu0 %v1056
    %1216 = vmatpush.bf16.msra.mxu0 %v1048
    %1217 = vmatpush.bf16.msra.mxu0 %v1040
    %1218 = vmatpush.bf16.msra.mxu0 %v1032
    %1219 = vmatpush.bf16.msra.mxu0 %v1024
    %1220 = vmatmul.bf16.gmra.mxu0 %v744
    %v1221 = vpop.f32.mrf.mxu0
    %v1222 = vadd.f32 %v816, %v1221
    %v1223 = vpop.f32.mrf.mxu0
    %1224 = vdwg.mxu0
    %1225 = vmatpush.bf16.msra.mxu0 %v1081
    %1226 = vmatpush.bf16.msra.mxu0 %v1073
    %1227 = vmatpush.bf16.msra.mxu0 %v1065
    %1228 = vmatpush.bf16.msra.mxu0 %v1057
    %1229 = vmatpush.bf16.msra.mxu0 %v1049
    %1230 = vmatpush.bf16.msra.mxu0 %v1041
    %1231 = vmatpush.bf16.msra.mxu0 %v1033
    %1232 = vmatpush.bf16.msra.mxu0 %v1025
    %1233 = vmatmul.bf16.gmra.mxu0 %v744
    %v1234 = vpop.f32.mrf.mxu0
    %v1235 = vadd.f32 %v817, %v1234
    %v1236 = vpop.f32.mrf.mxu0
    %1237 = vdwg.mxu0
    %1238 = vmatpush.bf16.msra.mxu0 %v1082
    %1239 = vmatpush.bf16.msra.mxu0 %v1074
    %1240 = vmatpush.bf16.msra.mxu0 %v1066
    %1241 = vmatpush.bf16.msra.mxu0 %v1058
    %1242 = vmatpush.bf16.msra.mxu0 %v1050
    %1243 = vmatpush.bf16.msra.mxu0 %v1042
    %1244 = vmatpush.bf16.msra.mxu0 %v1034
    %1245 = vmatpush.bf16.msra.mxu0 %v1026
    %1246 = vmatmul.bf16.gmra.mxu0 %v744
    %v1247 = vpop.f32.mrf.mxu0
    %v1248 = vadd.f32 %v818, %v1247
    %v1249 = vpop.f32.mrf.mxu0
    %1250 = vdwg.mxu0
    %v1251 = vpack.c.bf16 %v1157, %v1157
    %v1252 = vpack.c.bf16 %v1170, %v1170
    %v1253 = vpack.c.bf16 %v1183, %v1183
    %v1254 = vpack.c.bf16 %v1196, %v1196
    %v1255 = vpack.c.bf16 %v1209, %v1209
    %v1256 = vpack.c.bf16 %v1222, %v1222
    %v1257 = vpack.c.bf16 %v1235, %v1235
    %v1258 = vpack.c.bf16 %v1248, %v1248
    %v1259 = vld [vmem:[%s9] sm:$0xf]
    %v1260 = vld [vmem:[%s9 + $0x4] sm:$0xf]
    %v1261 = vld [vmem:[%s9 + $0x8] sm:$0xf]
    %v1262 = vld [vmem:[%s9 + $0xc] sm:$0xf]
    %v1263 = vld [vmem:[%s9 + $0x10] sm:$0xf]
    %v1264 = vld [vmem:[%s9 + $0x14] sm:$0xf]
    %v1265 = vld [vmem:[%s9 + $0x18] sm:$0xf]
    %v1266 = vld [vmem:[%s9 + $0x1c] sm:$0xf]
    %v1267 = vld [vmem:[%s9 + $0x20] sm:$0xf]
    %v1268 = vld [vmem:[%s9 + $0x24] sm:$0xf]
    %v1269 = vld [vmem:[%s9 + $0x28] sm:$0xf]
    %v1270 = vld [vmem:[%s9 + $0x2c] sm:$0xf]
    %v1271 = vld [vmem:[%s9 + $0x30] sm:$0xf]
    %v1272 = vld [vmem:[%s9 + $0x34] sm:$0xf]
    %v1273 = vld [vmem:[%s9 + $0x38] sm:$0xf]
    %v1274 = vld [vmem:[%s9 + $0x3c] sm:$0xf]
    %v1275 = vld [vmem:[%s9 + $0x40] sm:$0xf]
    %v1276 = vld [vmem:[%s9 + $0x44] sm:$0xf]
    %v1277 = vld [vmem:[%s9 + $0x48] sm:$0xf]
    %v1278 = vld [vmem:[%s9 + $0x4c] sm:$0xf]
    %v1279 = vld [vmem:[%s9 + $0x50] sm:$0xf]
    %v1280 = vld [vmem:[%s9 + $0x54] sm:$0xf]
    %v1281 = vld [vmem:[%s9 + $0x58] sm:$0xf]
    %v1282 = vld [vmem:[%s9 + $0x5c] sm:$0xf]
    %v1283 = vld [vmem:[%s9 + $0x60] sm:$0xf]
    %v1284 = vld [vmem:[%s9 + $0x64] sm:$0xf]
    %v1285 = vld [vmem:[%s9 + $0x68] sm:$0xf]
    %v1286 = vld [vmem:[%s9 + $0x6c] sm:$0xf]
    %v1287 = vld [vmem:[%s9 + $0x70] sm:$0xf]
    %v1288 = vld [vmem:[%s9 + $0x74] sm:$0xf]
    %v1289 = vld [vmem:[%s9 + $0x78] sm:$0xf]
    %v1290 = vld [vmem:[%s9 + $0x7c] sm:$0xf]
    %v1291 = vld [vmem:[%s9 + $0x80] sm:$0xf]
    %v1292 = vld [vmem:[%s9 + $0x84] sm:$0xf]
    %v1293 = vld [vmem:[%s9 + $0x88] sm:$0xf]
    %v1294 = vld [vmem:[%s9 + $0x8c] sm:$0xf]
    %v1295 = vld [vmem:[%s9 + $0x90] sm:$0xf]
    %v1296 = vld [vmem:[%s9 + $0x94] sm:$0xf]
    %v1297 = vld [vmem:[%s9 + $0x98] sm:$0xf]
    %v1298 = vld [vmem:[%s9 + $0x9c] sm:$0xf]
    %v1299 = vld [vmem:[%s9 + $0xa0] sm:$0xf]
    %v1300 = vld [vmem:[%s9 + $0xa4] sm:$0xf]
    %v1301 = vld [vmem:[%s9 + $0xa8] sm:$0xf]
    %v1302 = vld [vmem:[%s9 + $0xac] sm:$0xf]
    %v1303 = vld [vmem:[%s9 + $0xb0] sm:$0xf]
    %v1304 = vld [vmem:[%s9 + $0xb4] sm:$0xf]
    %v1305 = vld [vmem:[%s9 + $0xb8] sm:$0xf]
    %v1306 = vld [vmem:[%s9 + $0xbc] sm:$0xf]
    %v1307 = vld [vmem:[%s9 + $0xc0] sm:$0xf]
    %v1308 = vld [vmem:[%s9 + $0xc4] sm:$0xf]
    %v1309 = vld [vmem:[%s9 + $0xc8] sm:$0xf]
    %v1310 = vld [vmem:[%s9 + $0xcc] sm:$0xf]
    %v1311 = vld [vmem:[%s9 + $0xd0] sm:$0xf]
    %v1312 = vld [vmem:[%s9 + $0xd4] sm:$0xf]
    %v1313 = vld [vmem:[%s9 + $0xd8] sm:$0xf]
    %v1314 = vld [vmem:[%s9 + $0xdc] sm:$0xf]
    %v1315 = vld [vmem:[%s9 + $0xe0] sm:$0xf]
    %v1316 = vld [vmem:[%s9 + $0xe4] sm:$0xf]
    %v1317 = vld [vmem:[%s9 + $0xe8] sm:$0xf]
    %v1318 = vld [vmem:[%s9 + $0xec] sm:$0xf]
    %v1319 = vld [vmem:[%s9 + $0xf0] sm:$0xf]
    %v1320 = vld [vmem:[%s9 + $0xf4] sm:$0xf]
    %v1321 = vld [vmem:[%s9 + $0xf8] sm:$0xf]
    %v1322 = vld [vmem:[%s9 + $0xfc] sm:$0xf]
    %v1323 = vld [vmem:[%s9 + $0x100] sm:$0xf]
    %v1324 = vld [vmem:[%s9 + $0x104] sm:$0xf]
    %v1325 = vld [vmem:[%s9 + $0x108] sm:$0xf]
    %v1326 = vld [vmem:[%s9 + $0x10c] sm:$0xf]
    %v1327 = vld [vmem:[%s9 + $0x110] sm:$0xf]
    %v1328 = vld [vmem:[%s9 + $0x114] sm:$0xf]
    %v1329 = vld [vmem:[%s9 + $0x118] sm:$0xf]
    %v1330 = vld [vmem:[%s9 + $0x11c] sm:$0xf]
    %v1331 = vld [vmem:[%s9 + $0x120] sm:$0xf]
    %v1332 = vld [vmem:[%s9 + $0x124] sm:$0xf]
    %v1333 = vld [vmem:[%s9 + $0x128] sm:$0xf]
    %v1334 = vld [vmem:[%s9 + $0x12c] sm:$0xf]
    %v1335 = vld [vmem:[%s9 + $0x130] sm:$0xf]
    %v1336 = vld [vmem:[%s9 + $0x134] sm:$0xf]
    %v1337 = vld [vmem:[%s9 + $0x138] sm:$0xf]
    %v1338 = vld [vmem:[%s9 + $0x13c] sm:$0xf]
    %v1339 = vld [vmem:[%s9 + $0x140] sm:$0xf]
    %v1340 = vld [vmem:[%s9 + $0x144] sm:$0xf]
    %v1341 = vld [vmem:[%s9 + $0x148] sm:$0xf]
    %v1342 = vld [vmem:[%s9 + $0x14c] sm:$0xf]
    %v1343 = vld [vmem:[%s9 + $0x150] sm:$0xf]
    %v1344 = vld [vmem:[%s9 + $0x154] sm:$0xf]
    %v1345 = vld [vmem:[%s9 + $0x158] sm:$0xf]
    %v1346 = vld [vmem:[%s9 + $0x15c] sm:$0xf]
    %v1347 = vld [vmem:[%s9 + $0x160] sm:$0xf]
    %v1348 = vld [vmem:[%s9 + $0x164] sm:$0xf]
    %v1349 = vld [vmem:[%s9 + $0x168] sm:$0xf]
    %v1350 = vld [vmem:[%s9 + $0x16c] sm:$0xf]
    %v1351 = vld [vmem:[%s9 + $0x170] sm:$0xf]
    %v1352 = vld [vmem:[%s9 + $0x174] sm:$0xf]
    %v1353 = vld [vmem:[%s9 + $0x178] sm:$0xf]
    %v1354 = vld [vmem:[%s9 + $0x17c] sm:$0xf]
    %v1355 = vld [vmem:[%s9 + $0x180] sm:$0xf]
    %v1356 = vld [vmem:[%s9 + $0x184] sm:$0xf]
    %v1357 = vld [vmem:[%s9 + $0x188] sm:$0xf]
    %v1358 = vld [vmem:[%s9 + $0x18c] sm:$0xf]
    %v1359 = vld [vmem:[%s9 + $0x190] sm:$0xf]
    %v1360 = vld [vmem:[%s9 + $0x194] sm:$0xf]
    %v1361 = vld [vmem:[%s9 + $0x198] sm:$0xf]
    %v1362 = vld [vmem:[%s9 + $0x19c] sm:$0xf]
    %v1363 = vld [vmem:[%s9 + $0x1a0] sm:$0xf]
    %v1364 = vld [vmem:[%s9 + $0x1a4] sm:$0xf]
    %v1365 = vld [vmem:[%s9 + $0x1a8] sm:$0xf]
    %v1366 = vld [vmem:[%s9 + $0x1ac] sm:$0xf]
    %v1367 = vld [vmem:[%s9 + $0x1b0] sm:$0xf]
    %v1368 = vld [vmem:[%s9 + $0x1b4] sm:$0xf]
    %v1369 = vld [vmem:[%s9 + $0x1b8] sm:$0xf]
    %v1370 = vld [vmem:[%s9 + $0x1bc] sm:$0xf]
    %v1371 = vld [vmem:[%s9 + $0x1c0] sm:$0xf]
    %v1372 = vld [vmem:[%s9 + $0x1c4] sm:$0xf]
    %v1373 = vld [vmem:[%s9 + $0x1c8] sm:$0xf]
    %v1374 = vld [vmem:[%s9 + $0x1cc] sm:$0xf]
    %v1375 = vld [vmem:[%s9 + $0x1d0] sm:$0xf]
    %v1376 = vld [vmem:[%s9 + $0x1d4] sm:$0xf]
    %v1377 = vld [vmem:[%s9 + $0x1d8] sm:$0xf]
    %v1378 = vld [vmem:[%s9 + $0x1dc] sm:$0xf]
    %v1379 = vld [vmem:[%s9 + $0x1e0] sm:$0xf]
    %v1380 = vld [vmem:[%s9 + $0x1e4] sm:$0xf]
    %v1381 = vld [vmem:[%s9 + $0x1e8] sm:$0xf]
    %v1382 = vld [vmem:[%s9 + $0x1ec] sm:$0xf]
    %v1383 = vld [vmem:[%s9 + $0x1f0] sm:$0xf]
    %v1384 = vld [vmem:[%s9 + $0x1f4] sm:$0xf]
    %v1385 = vld [vmem:[%s9 + $0x1f8] sm:$0xf]
    %v1386 = vld [vmem:[%s9 + $0x1fc] sm:$0xf]
    %v1387 = vld [vmem:[%s10] sm:$0x1]
    %v1389 = vperm.slane %v1387, 0
    %v1519 = vunpack.c.l.b16 %v1259
    %v1520 = vunpack.c.l.b16 %v1260
    %v1521 = vunpack.c.l.b16 %v1261
    %v1522 = vunpack.c.l.b16 %v1262
    %v1523 = vunpack.c.l.b16 %v1263
    %v1524 = vunpack.c.l.b16 %v1264
    %v1525 = vunpack.c.l.b16 %v1265
    %v1526 = vunpack.c.l.b16 %v1266
    %v1527 = vunpack.c.l.b16 %v1267
    %v1528 = vunpack.c.l.b16 %v1268
    %v1529 = vunpack.c.l.b16 %v1269
    %v1530 = vunpack.c.l.b16 %v1270
    %v1531 = vunpack.c.l.b16 %v1271
    %v1532 = vunpack.c.l.b16 %v1272
    %v1533 = vunpack.c.l.b16 %v1273
    %v1534 = vunpack.c.l.b16 %v1274
    %v1535 = vunpack.c.l.b16 %v1275
    %v1536 = vunpack.c.l.b16 %v1276
    %v1537 = vunpack.c.l.b16 %v1277
    %v1538 = vunpack.c.l.b16 %v1278
    %v1539 = vunpack.c.l.b16 %v1279
    %v1540 = vunpack.c.l.b16 %v1280
    %v1541 = vunpack.c.l.b16 %v1281
    %v1542 = vunpack.c.l.b16 %v1282
    %v1543 = vunpack.c.l.b16 %v1283
    %v1544 = vunpack.c.l.b16 %v1284
    %v1545 = vunpack.c.l.b16 %v1285
    %v1546 = vunpack.c.l.b16 %v1286
    %v1547 = vunpack.c.l.b16 %v1287
    %v1548 = vunpack.c.l.b16 %v1288
    %v1549 = vunpack.c.l.b16 %v1289
    %v1550 = vunpack.c.l.b16 %v1290
    %v1551 = vunpack.c.l.b16 %v1291
    %v1552 = vunpack.c.l.b16 %v1292
    %v1553 = vunpack.c.l.b16 %v1293
    %v1554 = vunpack.c.l.b16 %v1294
    %v1555 = vunpack.c.l.b16 %v1295
    %v1556 = vunpack.c.l.b16 %v1296
    %v1557 = vunpack.c.l.b16 %v1297
    %v1558 = vunpack.c.l.b16 %v1298
    %v1559 = vunpack.c.l.b16 %v1299
    %v1560 = vunpack.c.l.b16 %v1300
    %v1561 = vunpack.c.l.b16 %v1301
    %v1562 = vunpack.c.l.b16 %v1302
    %v1563 = vunpack.c.l.b16 %v1303
    %v1564 = vunpack.c.l.b16 %v1304
    %v1565 = vunpack.c.l.b16 %v1305
    %v1566 = vunpack.c.l.b16 %v1306
    %v1567 = vunpack.c.l.b16 %v1307
    %v1568 = vunpack.c.l.b16 %v1308
    %v1569 = vunpack.c.l.b16 %v1309
    %v1570 = vunpack.c.l.b16 %v1310
    %v1571 = vunpack.c.l.b16 %v1311
    %v1572 = vunpack.c.l.b16 %v1312
    %v1573 = vunpack.c.l.b16 %v1313
    %v1574 = vunpack.c.l.b16 %v1314
    %v1575 = vunpack.c.l.b16 %v1315
    %v1576 = vunpack.c.l.b16 %v1316
    %v1577 = vunpack.c.l.b16 %v1317
    %v1578 = vunpack.c.l.b16 %v1318
    %v1579 = vunpack.c.l.b16 %v1319
    %v1580 = vunpack.c.l.b16 %v1320
    %v1581 = vunpack.c.l.b16 %v1321
    %v1582 = vunpack.c.l.b16 %v1322
    %v1583 = vunpack.c.l.b16 %v1323
    %v1584 = vunpack.c.l.b16 %v1324
    %v1585 = vunpack.c.l.b16 %v1325
    %v1586 = vunpack.c.l.b16 %v1326
    %v1587 = vunpack.c.l.b16 %v1327
    %v1588 = vunpack.c.l.b16 %v1328
    %v1589 = vunpack.c.l.b16 %v1329
    %v1590 = vunpack.c.l.b16 %v1330
    %v1591 = vunpack.c.l.b16 %v1331
    %v1592 = vunpack.c.l.b16 %v1332
    %v1593 = vunpack.c.l.b16 %v1333
    %v1594 = vunpack.c.l.b16 %v1334
    %v1595 = vunpack.c.l.b16 %v1335
    %v1596 = vunpack.c.l.b16 %v1336
    %v1597 = vunpack.c.l.b16 %v1337
    %v1598 = vunpack.c.l.b16 %v1338
    %v1599 = vunpack.c.l.b16 %v1339
    %v1600 = vunpack.c.l.b16 %v1340
    %v1601 = vunpack.c.l.b16 %v1341
    %v1602 = vunpack.c.l.b16 %v1342
    %v1603 = vunpack.c.l.b16 %v1343
    %v1604 = vunpack.c.l.b16 %v1344
    %v1605 = vunpack.c.l.b16 %v1345
    %v1606 = vunpack.c.l.b16 %v1346
    %v1607 = vunpack.c.l.b16 %v1347
    %v1608 = vunpack.c.l.b16 %v1348
    %v1609 = vunpack.c.l.b16 %v1349
    %v1610 = vunpack.c.l.b16 %v1350
    %v1611 = vunpack.c.l.b16 %v1351
    %v1612 = vunpack.c.l.b16 %v1352
    %v1613 = vunpack.c.l.b16 %v1353
    %v1614 = vunpack.c.l.b16 %v1354
    %v1615 = vunpack.c.l.b16 %v1355
    %v1616 = vunpack.c.l.b16 %v1356
    %v1617 = vunpack.c.l.b16 %v1357
    %v1618 = vunpack.c.l.b16 %v1358
    %v1619 = vunpack.c.l.b16 %v1359
    %v1620 = vunpack.c.l.b16 %v1360
    %v1621 = vunpack.c.l.b16 %v1361
    %v1622 = vunpack.c.l.b16 %v1362
    %v1623 = vunpack.c.l.b16 %v1363
    %v1624 = vunpack.c.l.b16 %v1364
    %v1625 = vunpack.c.l.b16 %v1365
    %v1626 = vunpack.c.l.b16 %v1366
    %v1627 = vunpack.c.l.b16 %v1367
    %v1628 = vunpack.c.l.b16 %v1368
    %v1629 = vunpack.c.l.b16 %v1369
    %v1630 = vunpack.c.l.b16 %v1370
    %v1631 = vunpack.c.l.b16 %v1371
    %v1632 = vunpack.c.l.b16 %v1372
    %v1633 = vunpack.c.l.b16 %v1373
    %v1634 = vunpack.c.l.b16 %v1374
    %v1635 = vunpack.c.l.b16 %v1375
    %v1636 = vunpack.c.l.b16 %v1376
    %v1637 = vunpack.c.l.b16 %v1377
    %v1638 = vunpack.c.l.b16 %v1378
    %v1639 = vunpack.c.l.b16 %v1379
    %v1640 = vunpack.c.l.b16 %v1380
    %v1641 = vunpack.c.l.b16 %v1381
    %v1642 = vunpack.c.l.b16 %v1382
    %v1643 = vunpack.c.l.b16 %v1383
    %v1644 = vunpack.c.l.b16 %v1384
    %v1645 = vunpack.c.l.b16 %v1385
    %v1646 = vunpack.c.l.b16 %v1386
    %v1647 = vpack.c.b16 %v1520, %v1519
    %v1648 = vpack.c.b16 %v1522, %v1521
    %v1649 = vpack.c.b16 %v1524, %v1523
    %v1650 = vpack.c.b16 %v1526, %v1525
    %v1651 = vpack.c.b16 %v1528, %v1527
    %v1652 = vpack.c.b16 %v1530, %v1529
    %v1653 = vpack.c.b16 %v1532, %v1531
    %v1654 = vpack.c.b16 %v1534, %v1533
    %v1655 = vpack.c.b16 %v1536, %v1535
    %v1656 = vpack.c.b16 %v1538, %v1537
    %v1657 = vpack.c.b16 %v1540, %v1539
    %v1658 = vpack.c.b16 %v1542, %v1541
    %v1659 = vpack.c.b16 %v1544, %v1543
    %v1660 = vpack.c.b16 %v1546, %v1545
    %v1661 = vpack.c.b16 %v1548, %v1547
    %v1662 = vpack.c.b16 %v1550, %v1549
    %v1663 = vpack.c.b16 %v1552, %v1551
    %v1664 = vpack.c.b16 %v1554, %v1553
    %v1665 = vpack.c.b16 %v1556, %v1555
    %v1666 = vpack.c.b16 %v1558, %v1557
    %v1667 = vpack.c.b16 %v1560, %v1559
    %v1668 = vpack.c.b16 %v1562, %v1561
    %v1669 = vpack.c.b16 %v1564, %v1563
    %v1670 = vpack.c.b16 %v1566, %v1565
    %v1671 = vpack.c.b16 %v1568, %v1567
    %v1672 = vpack.c.b16 %v1570, %v1569
    %v1673 = vpack.c.b16 %v1572, %v1571
    %v1674 = vpack.c.b16 %v1574, %v1573
    %v1675 = vpack.c.b16 %v1576, %v1575
    %v1676 = vpack.c.b16 %v1578, %v1577
    %v1677 = vpack.c.b16 %v1580, %v1579
    %v1678 = vpack.c.b16 %v1582, %v1581
    %v1679 = vpack.c.b16 %v1584, %v1583
    %v1680 = vpack.c.b16 %v1586, %v1585
    %v1681 = vpack.c.b16 %v1588, %v1587
    %v1682 = vpack.c.b16 %v1590, %v1589
    %v1683 = vpack.c.b16 %v1592, %v1591
    %v1684 = vpack.c.b16 %v1594, %v1593
    %v1685 = vpack.c.b16 %v1596, %v1595
    %v1686 = vpack.c.b16 %v1598, %v1597
    %v1687 = vpack.c.b16 %v1600, %v1599
    %v1688 = vpack.c.b16 %v1602, %v1601
    %v1689 = vpack.c.b16 %v1604, %v1603
    %v1690 = vpack.c.b16 %v1606, %v1605
    %v1691 = vpack.c.b16 %v1608, %v1607
    %v1692 = vpack.c.b16 %v1610, %v1609
    %v1693 = vpack.c.b16 %v1612, %v1611
    %v1694 = vpack.c.b16 %v1614, %v1613
    %v1695 = vpack.c.b16 %v1616, %v1615
    %v1696 = vpack.c.b16 %v1618, %v1617
    %v1697 = vpack.c.b16 %v1620, %v1619
    %v1698 = vpack.c.b16 %v1622, %v1621
    %v1699 = vpack.c.b16 %v1624, %v1623
    %v1700 = vpack.c.b16 %v1626, %v1625
    %v1701 = vpack.c.b16 %v1628, %v1627
    %v1702 = vpack.c.b16 %v1630, %v1629
    %v1703 = vpack.c.b16 %v1632, %v1631
    %v1704 = vpack.c.b16 %v1634, %v1633
    %v1705 = vpack.c.b16 %v1636, %v1635
    %v1706 = vpack.c.b16 %v1638, %v1637
    %v1707 = vpack.c.b16 %v1640, %v1639
    %v1708 = vpack.c.b16 %v1642, %v1641
    %v1709 = vpack.c.b16 %v1644, %v1643
    %v1710 = vpack.c.b16 %v1646, %v1645
    %1775 = vmatpush.bf16.msra.mxu0 %v1654
    %1776 = vmatpush.bf16.msra.mxu0 %v1653
    %1777 = vmatpush.bf16.msra.mxu0 %v1652
    %1778 = vmatpush.bf16.msra.mxu0 %v1651
    %1779 = vmatpush.bf16.msra.mxu0 %v1650
    %1780 = vmatpush.bf16.msra.mxu0 %v1649
    %1781 = vmatpush.bf16.msra.mxu0 %v1648
    %1782 = vmatpush.bf16.msra.mxu0 %v1647
    %1783 = vmatmul.bf16.gmra.mxu0 %v1251
    %v1784 = vpop.f32.mrf.mxu0
    %v1785 = vadd.f32 %v1389, %v1784
    %v1786 = vpop.f32.mrf.mxu0
    %1787 = vdwg.mxu0
    %1788 = vmatpush.bf16.msra.mxu0 %v1662
    %1789 = vmatpush.bf16.msra.mxu0 %v1661
    %1790 = vmatpush.bf16.msra.mxu0 %v1660
    %1791 = vmatpush.bf16.msra.mxu0 %v1659
    %1792 = vmatpush.bf16.msra.mxu0 %v1658
    %1793 = vmatpush.bf16.msra.mxu0 %v1657
    %1794 = vmatpush.bf16.msra.mxu0 %v1656
    %1795 = vmatpush.bf16.msra.mxu0 %v1655
    %1796 = vmatmul.bf16.gmra.mxu0 %v1252
    %v1797 = vpop.f32.mrf.mxu0
    %v1798 = vadd.f32 %v1785, %v1797
    %v1799 = vpop.f32.mrf.mxu0
    %1800 = vdwg.mxu0
    %1801 = vmatpush.bf16.msra.mxu0 %v1670
    %1802 = vmatpush.bf16.msra.mxu0 %v1669
    %1803 = vmatpush.bf16.msra.mxu0 %v1668
    %1804 = vmatpush.bf16.msra.mxu0 %v1667
    %1805 = vmatpush.bf16.msra.mxu0 %v1666
    %1806 = vmatpush.bf16.msra.mxu0 %v1665
    %1807 = vmatpush.bf16.msra.mxu0 %v1664
    %1808 = vmatpush.bf16.msra.mxu0 %v1663
    %1809 = vmatmul.bf16.gmra.mxu0 %v1253
    %v1810 = vpop.f32.mrf.mxu0
    %v1811 = vadd.f32 %v1798, %v1810
    %v1812 = vpop.f32.mrf.mxu0
    %1813 = vdwg.mxu0
    %1814 = vmatpush.bf16.msra.mxu0 %v1678
    %1815 = vmatpush.bf16.msra.mxu0 %v1677
    %1816 = vmatpush.bf16.msra.mxu0 %v1676
    %1817 = vmatpush.bf16.msra.mxu0 %v1675
    %1818 = vmatpush.bf16.msra.mxu0 %v1674
    %1819 = vmatpush.bf16.msra.mxu0 %v1673
    %1820 = vmatpush.bf16.msra.mxu0 %v1672
    %1821 = vmatpush.bf16.msra.mxu0 %v1671
    %1822 = vmatmul.bf16.gmra.mxu0 %v1254
    %v1823 = vpop.f32.mrf.mxu0
    %v1824 = vadd.f32 %v1811, %v1823
    %v1825 = vpop.f32.mrf.mxu0
    %1826 = vdwg.mxu0
    %1827 = vmatpush.bf16.msra.mxu0 %v1686
    %1828 = vmatpush.bf16.msra.mxu0 %v1685
    %1829 = vmatpush.bf16.msra.mxu0 %v1684
    %1830 = vmatpush.bf16.msra.mxu0 %v1683
    %1831 = vmatpush.bf16.msra.mxu0 %v1682
    %1832 = vmatpush.bf16.msra.mxu0 %v1681
    %1833 = vmatpush.bf16.msra.mxu0 %v1680
    %1834 = vmatpush.bf16.msra.mxu0 %v1679
    %1835 = vmatmul.bf16.gmra.mxu0 %v1255
    %v1836 = vpop.f32.mrf.mxu0
    %v1837 = vadd.f32 %v1824, %v1836
    %v1838 = vpop.f32.mrf.mxu0
    %1839 = vdwg.mxu0
    %1840 = vmatpush.bf16.msra.mxu0 %v1694
    %1841 = vmatpush.bf16.msra.mxu0 %v1693
    %1842 = vmatpush.bf16.msra.mxu0 %v1692
    %1843 = vmatpush.bf16.msra.mxu0 %v1691
    %1844 = vmatpush.bf16.msra.mxu0 %v1690
    %1845 = vmatpush.bf16.msra.mxu0 %v1689
    %1846 = vmatpush.bf16.msra.mxu0 %v1688
    %1847 = vmatpush.bf16.msra.mxu0 %v1687
    %1848 = vmatmul.bf16.gmra.mxu0 %v1256
    %v1849 = vpop.f32.mrf.mxu0
    %v1850 = vadd.f32 %v1837, %v1849
    %v1851 = vpop.f32.mrf.mxu0
    %1852 = vdwg.mxu0
    %1853 = vmatpush.bf16.msra.mxu0 %v1702
    %1854 = vmatpush.bf16.msra.mxu0 %v1701
    %1855 = vmatpush.bf16.msra.mxu0 %v1700
    %1856 = vmatpush.bf16.msra.mxu0 %v1699
    %1857 = vmatpush.bf16.msra.mxu0 %v1698
    %1858 = vmatpush.bf16.msra.mxu0 %v1697
    %1859 = vmatpush.bf16.msra.mxu0 %v1696
    %1860 = vmatpush.bf16.msra.mxu0 %v1695
    %1861 = vmatmul.bf16.gmra.mxu0 %v1257
    %v1862 = vpop.f32.mrf.mxu0
    %v1863 = vadd.f32 %v1850, %v1862
    %v1864 = vpop.f32.mrf.mxu0
    %1865 = vdwg.mxu0
    %1866 = vmatpush.bf16.msra.mxu0 %v1710
    %1867 = vmatpush.bf16.msra.mxu0 %v1709
    %1868 = vmatpush.bf16.msra.mxu0 %v1708
    %1869 = vmatpush.bf16.msra.mxu0 %v1707
    %1870 = vmatpush.bf16.msra.mxu0 %v1706
    %1871 = vmatpush.bf16.msra.mxu0 %v1705
    %1872 = vmatpush.bf16.msra.mxu0 %v1704
    %1873 = vmatpush.bf16.msra.mxu0 %v1703
    %1874 = vmatmul.bf16.gmra.mxu0 %v1258
    %v1875 = vpop.f32.mrf.mxu0
    %v1876 = vadd.f32 %v1863, %v1875
    %v1877 = vpop.f32.mrf.mxu0
    %1878 = vdwg.mxu0
    %vm1879 = vcmask 41984
    %1880 = vst.msk [vmem:[#allocation12] sm:$0x3] %vm1879, %v1876
    %v1881 = vsel %vm1879, %v1876, -inf
    %v1882 = vrot.slane %v1881, 4
    %v1883 = vmax.f32 %v1881, %v1882
    %v1884 = vrot.slane %v1883, 2
    %v1885 = vmax.f32 %v1883, %v1884
    %v1886 = vrot.slane %v1885, 1
    %v1887 = vmax.f32 %v1885, %v1886
    %v1888 = vsub.f32 %v1876, %v1887
    %v1889 = vmul.f32 %v1888, 1.442695
    %v1890 = vpow.pop %v1889
    %v1891 = vsel %vm1879, %v1890, 0.0
    %v1892 = vrot.slane %v1891, 4
    %v1893 = vadd.f32 %v1891, %v1892
    %v1894 = vrot.slane %v1893, 2
    %v1895 = vadd.f32 %v1893, %v1894
    %v1896 = vrot.slane %v1895, 1
    %v1897 = vadd.f32 %v1895, %v1896
    %v1898 = vrcp.pop %v1897
    %v1899 = vmul.f32 %v1897, %v1898
    %v1900 = vsub.f32 1.0, %v1899
    %v1901 = vmul.f32 %v1898, %v1900
    %v1902 = vadd.f32 %v1898, %v1901
    %vm1903 = vweird.f32 %v1897
    %vm1904 = vweird.f32 %v1898
    %vm1905 = vmor %vm1903, %vm1904
    %v1906 = vsel %vm1905, %v1898, %v1902
    %v1907 = vand.u32 2147483647, %v1897
    %vm1908 = vcmp.eq.f32.partialorder %v1907, 8.507059e+37
    %v1909 = vand.u32 %v1897, 2147483648
    %v1910 = vor.u32 1.1754944e-38, %v1909
    %v1911 = vsel %vm1908, %v1910, %v1906
    %v1912 = vmul.f32 %v1890, %v1911
    %1913 = vst.msk [vmem:[#allocation11] sm:$0x3] %vm1879, %v1912
    // Predicated region
    $region66: #{tpu_custom_call.1} parent=1 // pred_check
      _
    $region67: #{tpu_custom_call.1} parent=1 // pred_check_branch
      %1915 = sbr.rel (0) target = $region69
    $region68: #{tpu_custom_call.1} parent=1 // pred_region
      %1917 = vsyncadd [#allocation4], 0
      %s1919 = sshll.u32 [#allocation11], 4
      %s1920 = int_to_ptr.vmem [resolvable:$true] %s1919
      %s1921 = sshll.u32 %s11, 4
      %s1922 = int_to_ptr.hbm [resolvable:$true] %s1921
      %1924 = dma.vmem_to_hbm [thread:$0]  %s1920, 32, %s1922, [#allocation4]
    $region69: #{tpu_custom_call.1} parent=1 // pred_fallthru
      _
    // Predicated region
    $region70: #{tpu_custom_call.1} parent=1 // pred_check
      _
    $region71: #{tpu_custom_call.1} parent=1 // pred_check_branch
      %1926 = sbr.rel (0) target = $region73
    $region72: #{tpu_custom_call.1} parent=1 // pred_region
      %1928 = vsyncadd [#allocation13], 0
      %s1930 = sshll.u32 [#allocation12], 4
      %s1931 = int_to_ptr.vmem [resolvable:$true] %s1930
      %s1932 = sshll.u32 %s12, 4
      %s1933 = int_to_ptr.hbm [resolvable:$true] %s1932
      %1935 = dma.vmem_to_hbm [thread:$0]  %s1931, 32, %s1933, [#allocation13]
    $region73: #{tpu_custom_call.1} parent=1 // pred_fallthru
      _
    // Predicated region
    $region74: #{tpu_custom_call.1} parent=1 // pred_check
      _
    $region75: #{tpu_custom_call.1} parent=1 // pred_check_branch
      %1937 = sbr.rel (0) target = $region77
    $region76: #{tpu_custom_call.1} parent=1 // pred_region
      %1939 = dma.done [#allocation4], 32
    $region77: #{tpu_custom_call.1} parent=1 // pred_fallthru
      _
    // Predicated region
    $region78: #{tpu_custom_call.1} parent=1 // pred_check
      _
    $region79: #{tpu_custom_call.1} parent=1 // pred_check_branch
      %1941 = sbr.rel (0) target = $region81
    $region80: #{tpu_custom_call.1} parent=1 // pred_region
      %1943 = dma.done [#allocation13], 32
    $region81: #{tpu_custom_call.1} parent=1 // pred_fallthru
      _
    %1944 = vsyncpa [#allocation3], 1
    %1945 = vsyncpa [#allocation6], 1
    %1946 = vsyncpa [#allocation9], 1
    %1947 = vsyncpa [#allocation4], 1
    %1948 = vsyncpa [#allocation13], 1

</llo_original>
